<compile_context>
chip_gen: v7x
topology: tpu7x:2x2x1
jax: 0.10.0
libtpu: 0.0.40
codegen_flags: <defaults>
</compile_context>

<pallas_src>
import functools

import jax
import jax.numpy as jnp
import numpy as np
from jax.experimental import pallas as pl
from jax.experimental.pallas import tpu as pltpu

C_IN = 128    # conv1 in_channels
C_MID = 64    # conv1 out_channels / conv2 in_channels
KH = KW = 3
N_TAP = KH * KW
W2_ROWS = 16  # conv2 tap rows padded 9 -> 16 for clean sublane tiling


def _surprise_kernel(x_ref, w1_ref, b1_ref, w2_ref, b2_ref, mask_ref, o_ref,
                     *, Bt, S, W, shifts):
    """One grid step over Bt images.

    x_ref   : (Bt, 128, S) f32    S = H*W, channels on sublanes, spatial on lanes
    w1_ref  : (192, 384)   bf16   row = dx*64 + m, col = dy*128 + c  (dy folded into K)
    b1_ref  : (64, 1)      f32
    w2_ref  : (16, 64)     bf16   rows 0..8 = taps (row = 3*dy + dx), rest zero
    b2_ref  : (1, 1)       f32
    mask_ref: (9, S)       f32    destination-side source-validity per 3x3 tap
    o_ref   : (Bt, 1, S)   f32    lane-dense sigmoid output
    """
    w1 = w1_ref[...]
    w2 = w2_ref[...]
    b1 = b1_ref[...]
    b2 = b2_ref[...]

    # Hoisted once per grid step (shared by all Bt images): mask rows + broadcasts.
    mrow = [mask_ref[t:t + 1, :] for t in range(N_TAP)]            # (1, S) f32 each
    rm_top = jnp.broadcast_to(mrow[1], (C_IN, S))                  # dy=0 row validity (i >= 1)
    rm_bot = jnp.broadcast_to(mrow[7], (C_IN, S))                  # dy=2 row validity (i <= H-2)
    cm_l = jnp.broadcast_to(mrow[3], (C_MID, S))                   # dx=0 col validity (j >= 1)
    cm_r = jnp.broadcast_to(mrow[5], (C_MID, S))                   # dx=2 col validity (j <= W-2)

    for b in range(Bt):
        xf = x_ref[b]                                              # (128, S) f32 from VMEM
        x_c = xf.astype(jnp.bfloat16)                              # in-kernel cast (no HBM pass)
        # dy folded into the contraction: row-shifted, row-masked copies (XLU rolls).
        x_top = (pltpu.roll(xf, W, 1) * rm_top).astype(jnp.bfloat16)
        x_bot = (pltpu.roll(xf, S - W, 1) * rm_bot).astype(jnp.bfloat16)
        x384 = jnp.concatenate([x_top, x_c, x_bot], axis=0)        # (384, S) bf16 RHS

        # conv1: one MXU matmul (K=384), then only 3 dx taps (center tap needs no roll/mask).
        y = jnp.dot(w1, x384, preferred_element_type=jnp.float32)  # (192, S) f32
        z = y[C_MID:2 * C_MID, :]                                  # dx=1 (center)
        z = z + pltpu.roll(y[:C_MID, :], 1, 1) * cm_l              # dx=0 -> shift +1
        z = z + pltpu.roll(y[2 * C_MID:, :], S - 1, 1) * cm_r      # dx=2 -> shift -1
        h = jnp.maximum(z + b1, 0.0)                               # ReLU, (64, S) f32

        # conv2: channel reduction on the MXU, then 8 masked lane rolls on (1, S) rows.
        p = jnp.dot(w2, h.astype(jnp.bfloat16),
                    preferred_element_type=jnp.float32)            # (16, S), rows 0..8 used
        logit = p[4:5, :]                                          # center tap (shift 0, mask 1)
        for tap in (0, 1, 2, 3, 5, 6, 7, 8):
            row = p[tap:tap + 1, :]
            if shifts[tap]:
                row = pltpu.roll(row, shifts[tap], 1)
            logit = logit + row * mrow[tap]

        o_ref[b, :, :] = jax.nn.sigmoid(logit + b2)                # lane-dense store


def _vmem_budget_bytes():
    """Chip-aware usable-VMEM estimate (v5e/v6e: 128 MiB physical, v7x: 64 MiB per TC)."""
    cap = 0
    try:
        cap = int(getattr(pltpu.get_tpu_info(), "vmem_capacity_bytes", 0) or 0)
    except Exception:
        cap = 0
    if cap <= 0:
        cap = 64 << 20          # conservative (v7x-sized) fallback
    return (cap * 3) // 4


def _pick_batch_tile(B, S_img):
    """Largest Bt (<= 8, divides B) whose working set fits the chip's VMEM budget.

    Bt <= 8 bounds the in-kernel unroll and, for larger B, still leaves >= 2 parallel
    grid steps for v7x's two TensorCores; tiny workloads run as a single big step.
    """
    budget = _vmem_budget_bytes()
    # Per-image bytes: double-buffered f32 input + output blocks, plus in-kernel
    # intermediates (bf16 x copies, (384,S) RHS, (192,S)/(64,S) f32 results, broadcasts).
    per_image = 2 * (C_IN + 1) * S_img * 4 + 4608 * S_img
    const_bytes = 2 * N_TAP * S_img * 4 + (1 << 20)     # masks (dbl-buffered) + weights/biases
    max_bt = max(1, min(8, (budget - const_bytes) // max(per_image, 1)))
    divisors = [d for d in range(1, min(B, max_bt) + 1) if B % d == 0]
    Bt = max(divisors)
    vmem_limit = int(min(budget, max(32 << 20, Bt * per_image + const_bytes)))
    return Bt, vmem_limit


def surprise_forward(x_nchw, w1_hwio, b1, w2_hwi, b2):
    """x_nchw: (B, 128, H, W) f32. Returns (B, 1, H, W) f32 (matches the PyTorch module)."""
    B, C, H, W = x_nchw.shape
    assert C == C_IN
    S = H * W
    # TODO(synk): lane-pad + validity-mask the spatial axis to support H*W % 128 != 0
    # (e.g. 28x28, 14x14); current version requires lane-dense (multiple-of-128) blocks.
    assert S % 128 == 0, "H*W must be a multiple of 128 for lane-dense blocks"

    Bt, vmem_limit = _pick_batch_tile(B, S)
    n_steps = B // Bt

    # NCHW is already channels-major per image: a free reshape exposes (B, 128, H*W).
    # No transpose / no pre-cast -> no extra HBM round trip; f32->bf16 happens in-kernel.
    x_flat = x_nchw.reshape(B, C_IN, S)

    # conv1 weights packed for the dy-folded contraction:
    #   W1[dx*64 + m, dy*128 + c] = w1_hwio[dy, dx, c, m]  -> (192, 384) bf16
    w1_k = jnp.transpose(w1_hwio, (1, 3, 0, 2)).reshape(KW * C_MID, KH * C_IN).astype(jnp.bfloat16)
    b1_k = b1.reshape(C_MID, 1).astype(jnp.float32)
    # conv2 weights: (3,3,64) -> (9,64), zero-padded to 16 rows.
    w2_k = jnp.zeros((W2_ROWS, C_MID), jnp.bfloat16).at[:N_TAP].set(
        w2_hwi.reshape(N_TAP, C_MID).astype(jnp.bfloat16))
    b2_k = b2.reshape(1, 1).astype(jnp.float32)

    # Per-tap static lane shifts and destination-side source-validity masks (3x3, pad=1).
    # Row 1/7 double as the conv1 dy row masks, rows 3/5 as the conv1 dx col masks.
    ii = np.arange(S) // W
    jj = np.arange(S) % W
    mask_np = np.zeros((N_TAP, S), np.float32)
    shifts = []
    for tap in range(N_TAP):
        dy, dx = tap // KW, tap % KW
        src_i, src_j = ii + dy - 1, jj + dx - 1
        mask_np[tap] = ((src_i >= 0) & (src_i < H) & (src_j >= 0) & (src_j < W))
        shifts.append((-((dy - 1) * W + (dx - 1))) % S)
    mask = jnp.asarray(mask_np)                                    # (9, S) f32

    kern = functools.partial(_surprise_kernel, Bt=Bt, S=S, W=W, shifts=tuple(shifts))

    out = pl.pallas_call(
        kern,
        out_shape=jax.ShapeDtypeStruct((B, 1, S), jnp.float32),
        grid_spec=pltpu.PrefetchScalarGridSpec(
            num_scalar_prefetch=0,
            grid=(n_steps,),
            in_specs=[
                pl.BlockSpec((Bt, C_IN, S), lambda g: (g, 0, 0)),             # x (f32, cast in-kernel)
                # Constant-index operands below are fetched once (block index 0 every step).
                # (On v7x, pipeline_mode=pl.Buffered(1) would also drop their double-buffer.)
                pl.BlockSpec((KW * C_MID, KH * C_IN), lambda g: (0, 0)),      # conv1 weights (192,384)
                pl.BlockSpec((C_MID, 1), lambda g: (0, 0)),                   # conv1 bias
                pl.BlockSpec((W2_ROWS, C_MID), lambda g: (0, 0)),             # conv2 weights
                pl.BlockSpec((1, 1), lambda g: (0, 0)),                       # conv2 bias
                pl.BlockSpec((N_TAP, S), lambda g: (0, 0)),                   # tap masks
            ],
            out_specs=pl.BlockSpec((Bt, 1, S), lambda g: (g, 0, 0)),          # lane-dense output
        ),
        compiler_params=pltpu.CompilerParams(
            dimension_semantics=("parallel",),
            vmem_limit_bytes=vmem_limit,
        ),
    )(x_flat, w1_k, b1_k, w2_k, b2_k, mask)

    return out.reshape(B, 1, H, W)


def ref_forward(x_nchw, w1_hwio, b1, w2_hwi, b2):
    """Pure-JAX f32 reference (lax conv) for correctness checking."""
    x = jnp.transpose(x_nchw, (0, 2, 3, 1))
    y = jax.lax.conv_general_dilated(
        x, w1_hwio, (1, 1), "SAME",
        dimension_numbers=("NHWC", "HWIO", "NHWC"),
        precision=jax.lax.Precision.HIGHEST)
    y = jax.nn.relu(y + b1)
    z = jax.lax.conv_general_dilated(
        y, w2_hwi.reshape(3, 3, C_MID, 1), (1, 1), "SAME",
        dimension_numbers=("NHWC", "HWIO", "NHWC"),
        precision=jax.lax.Precision.HIGHEST)
    z = jax.nn.sigmoid(z + b2)
    return jnp.transpose(z, (0, 3, 1, 2))


if __name__ == "__main__":
    key = jax.random.PRNGKey(0)
    k1, k2, k3, k4, k5 = jax.random.split(key, 5)

    B, H, W = 2, 16, 16
    x = jax.random.normal(k1, (B, C_IN, H, W), jnp.float32)

    # Deterministic synthetic parameters (shapes from nn.Conv2d init).
    w1 = jax.random.normal(k2, (3, 3, C_IN, C_MID), jnp.float32) * 0.05   # conv1 weight (HWIO)
    b1 = jax.random.normal(k3, (C_MID,), jnp.float32) * 0.05              # conv1 bias
    w2 = jax.random.normal(k4, (3, 3, C_MID), jnp.float32) * 0.05         # conv2 weight (1 out ch)
    b2 = jax.random.normal(k5, (1,), jnp.float32) * 0.05                  # conv2 bias

    out = jax.block_until_ready(surprise_forward(x, w1, b1, w2, b2))
    ref = ref_forward(x, w1, b1, w2, b2)

    assert out.shape == (B, 1, H, W), out.shape
    # bf16 MXU operands with f32 accumulation vs. an f32 HIGHEST-precision reference:
    # expect ~1e-2-level deviation, covered by the tolerance below.
    np.testing.assert_allclose(np.asarray(out), np.asarray(ref), atol=2e-2, rtol=2e-2)

    print("KERNEL_OK")
</pallas_src>

<mosaic_0001>
module attributes {stable_mosaic.version = 11 : i64} {
  func.func @_surprise_kernel(%arg0: i32, %arg1: memref<2x128x256xf32, #tpu.memory_space<vmem>>, %arg2: memref<192x384xbf16, #tpu.memory_space<vmem>>, %arg3: memref<64x1xf32, #tpu.memory_space<vmem>>, %arg4: memref<16x64xbf16, #tpu.memory_space<vmem>>, %arg5: memref<1x1xf32, #tpu.memory_space<vmem>>, %arg6: memref<9x256xf32, #tpu.memory_space<vmem>>, %arg7: memref<2x1x256xf32, #tpu.memory_space<vmem>>) attributes {dimension_semantics = [#tpu.dimension_semantics<parallel>], iteration_bounds = array<i64: 1>, scalar_prefetch = 0 : i64, scratch_operands = 0 : i64, tpu.core_type = #tpu.core_type<tc>, window_params = [{transform_indices = @transform_0, window_bounds = array<i64: 2, 128, 256>}, {pipeline_mode = #tpu.pipeline_mode<synchronous>, transform_indices = @transform_1, window_bounds = array<i64: 192, 384>}, {pipeline_mode = #tpu.pipeline_mode<synchronous>, transform_indices = @transform_2, window_bounds = array<i64: 64, 1>}, {pipeline_mode = #tpu.pipeline_mode<synchronous>, transform_indices = @transform_3, window_bounds = array<i64: 16, 64>}, {pipeline_mode = #tpu.pipeline_mode<synchronous>, transform_indices = @transform_4, window_bounds = array<i64: 1, 1>}, {pipeline_mode = #tpu.pipeline_mode<synchronous>, transform_indices = @transform_5, window_bounds = array<i64: 9, 256>}, {transform_indices = @transform_6, window_bounds = array<i64: 2, 1, 256>}]} {
    %c0 = arith.constant 0 : index
    %c0_0 = arith.constant 0 : index
    %0 = vector.load %arg2[%c0, %c0_0] : memref<192x384xbf16, #tpu.memory_space<vmem>>, vector<192x384xbf16>
    %c0_1 = arith.constant 0 : index
    %c0_2 = arith.constant 0 : index
    %1 = vector.load %arg4[%c0_1, %c0_2] : memref<16x64xbf16, #tpu.memory_space<vmem>>, vector<16x64xbf16>
    %c0_3 = arith.constant 0 : index
    %c0_4 = arith.constant 0 : index
    %2 = vector.load %arg3[%c0_3, %c0_4] : memref<64x1xf32, #tpu.memory_space<vmem>>, vector<64x1xf32>
    %c0_5 = arith.constant 0 : index
    %c0_6 = arith.constant 0 : index
    %3 = vector.load %arg5[%c0_5, %c0_6] : memref<1x1xf32, #tpu.memory_space<vmem>>, vector<1x1xf32>
    %c0_7 = arith.constant 0 : index
    %c0_8 = arith.constant 0 : index
    %4 = vector.load %arg6[%c0_7, %c0_8] : memref<9x256xf32, #tpu.memory_space<vmem>>, vector<1x256xf32>
    %c1 = arith.constant 1 : index
    %c0_9 = arith.constant 0 : index
    %5 = vector.load %arg6[%c1, %c0_9] : memref<9x256xf32, #tpu.memory_space<vmem>>, vector<1x256xf32>
    %c2 = arith.constant 2 : index
    %c0_10 = arith.constant 0 : index
    %6 = vector.load %arg6[%c2, %c0_10] : memref<9x256xf32, #tpu.memory_space<vmem>>, vector<1x256xf32>
    %c3 = arith.constant 3 : index
    %c0_11 = arith.constant 0 : index
    %7 = vector.load %arg6[%c3, %c0_11] : memref<9x256xf32, #tpu.memory_space<vmem>>, vector<1x256xf32>
    %c5 = arith.constant 5 : index
    %c0_12 = arith.constant 0 : index
    %8 = vector.load %arg6[%c5, %c0_12] : memref<9x256xf32, #tpu.memory_space<vmem>>, vector<1x256xf32>
    %c6 = arith.constant 6 : index
    %c0_13 = arith.constant 0 : index
    %9 = vector.load %arg6[%c6, %c0_13] : memref<9x256xf32, #tpu.memory_space<vmem>>, vector<1x256xf32>
    %c7 = arith.constant 7 : index
    %c0_14 = arith.constant 0 : index
    %10 = vector.load %arg6[%c7, %c0_14] : memref<9x256xf32, #tpu.memory_space<vmem>>, vector<1x256xf32>
    %c8 = arith.constant 8 : index
    %c0_15 = arith.constant 0 : index
    %11 = vector.load %arg6[%c8, %c0_15] : memref<9x256xf32, #tpu.memory_space<vmem>>, vector<1x256xf32>
    %12 = vector.shape_cast %5 : vector<1x256xf32> to vector<1x256xf32>
    %13 = vector.broadcast %12 : vector<1x256xf32> to vector<128x256xf32>
    %14 = vector.shape_cast %10 : vector<1x256xf32> to vector<1x256xf32>
    %15 = vector.broadcast %14 : vector<1x256xf32> to vector<128x256xf32>
    %16 = vector.shape_cast %7 : vector<1x256xf32> to vector<1x256xf32>
    %17 = vector.broadcast %16 : vector<1x256xf32> to vector<64x256xf32>
    %18 = vector.shape_cast %8 : vector<1x256xf32> to vector<1x256xf32>
    %19 = vector.broadcast %18 : vector<1x256xf32> to vector<64x256xf32>
    %c0_16 = arith.constant 0 : index
    %c0_17 = arith.constant 0 : index
    %c0_18 = arith.constant 0 : index
    %20 = vector.load %arg1[%c0_16, %c0_17, %c0_18] : memref<2x128x256xf32, #tpu.memory_space<vmem>>, vector<1x128x256xf32>
    %21 = vector.shape_cast %20 : vector<1x128x256xf32> to vector<128x256xf32>
    %22 = arith.truncf %21 : vector<128x256xf32> to vector<128x256xbf16>
    %c16_i32 = arith.constant 16 : i32
    %23 = tpu.dynamic_rotate %21 by %c16_i32 dim 1 : vector<128x256xf32>, i32 -> vector<128x256xf32>
    %24 = arith.mulf %23, %13 : vector<128x256xf32>
    %25 = arith.truncf %24 : vector<128x256xf32> to vector<128x256xbf16>
    %c240_i32 = arith.constant 240 : i32
    %26 = tpu.dynamic_rotate %21 by %c240_i32 dim 1 : vector<128x256xf32>, i32 -> vector<128x256xf32>
    %27 = arith.mulf %26, %15 : vector<128x256xf32>
    %28 = arith.truncf %27 : vector<128x256xf32> to vector<128x256xbf16>
    %29 = tpu.concatenate %25, %22, %28 in 0 : vector<128x256xbf16>, vector<128x256xbf16>, vector<128x256xbf16> -> vector<384x256xbf16>
    %cst = arith.constant dense<0.000000e+00> : vector<192x256xf32>
    %30 = tpu.matmul %0, %29, %cst {dimension_numbers = #tpu.dot_dimension_numbers<[1], [0], [0], [1], [0, 0, 1, 1], [], []>} : vector<192x384xbf16>, vector<384x256xbf16>, vector<192x256xf32> -> vector<192x256xf32>
    %31 = vector.extract_strided_slice %30 {offsets = [64, 0], sizes = [64, 256], strides = [1, 1]} : vector<192x256xf32> to vector<64x256xf32>
    %32 = vector.extract_strided_slice %30 {offsets = [0, 0], sizes = [64, 256], strides = [1, 1]} : vector<192x256xf32> to vector<64x256xf32>
    %c1_i32 = arith.constant 1 : i32
    %33 = tpu.dynamic_rotate %32 by %c1_i32 dim 1 : vector<64x256xf32>, i32 -> vector<64x256xf32>
    %34 = arith.mulf %33, %17 : vector<64x256xf32>
    %35 = arith.addf %31, %34 : vector<64x256xf32>
    %36 = vector.extract_strided_slice %30 {offsets = [128, 0], sizes = [64, 256], strides = [1, 1]} : vector<192x256xf32> to vector<64x256xf32>
    %c255_i32 = arith.constant 255 : i32
    %37 = tpu.dynamic_rotate %36 by %c255_i32 dim 1 : vector<64x256xf32>, i32 -> vector<64x256xf32>
    %38 = arith.mulf %37, %19 : vector<64x256xf32>
    %39 = arith.addf %35, %38 : vector<64x256xf32>
    %40 = vector.broadcast %2 : vector<64x1xf32> to vector<64x256xf32>
    %41 = arith.addf %39, %40 : vector<64x256xf32>
    %cst_19 = arith.constant 0.000000e+00 : f32
    %42 = vector.broadcast %cst_19 : f32 to vector<64x256xf32>
    %43 = arith.maximumf %41, %42 : vector<64x256xf32>
    %44 = arith.truncf %43 : vector<64x256xf32> to vector<64x256xbf16>
    %cst_20 = arith.constant dense<0.000000e+00> : vector<16x256xf32>
    %45 = tpu.matmul %1, %44, %cst_20 {dimension_numbers = #tpu.dot_dimension_numbers<[1], [0], [0], [1], [0, 0, 1, 1], [], []>} : vector<16x64xbf16>, vector<64x256xbf16>, vector<16x256xf32> -> vector<16x256xf32>
    %46 = vector.extract_strided_slice %45 {offsets = [4, 0], sizes = [1, 256], strides = [1, 1]} : vector<16x256xf32> to vector<1x256xf32>
    %47 = vector.extract_strided_slice %45 {offsets = [0, 0], sizes = [1, 256], strides = [1, 1]} : vector<16x256xf32> to vector<1x256xf32>
    %c17_i32 = arith.constant 17 : i32
    %48 = tpu.dynamic_rotate %47 by %c17_i32 dim 1 : vector<1x256xf32>, i32 -> vector<1x256xf32>
    %49 = arith.mulf %48, %4 : vector<1x256xf32>
    %50 = arith.addf %46, %49 : vector<1x256xf32>
    %51 = vector.extract_strided_slice %45 {offsets = [1, 0], sizes = [1, 256], strides = [1, 1]} : vector<16x256xf32> to vector<1x256xf32>
    %c16_i32_21 = arith.constant 16 : i32
    %52 = tpu.dynamic_rotate %51 by %c16_i32_21 dim 1 : vector<1x256xf32>, i32 -> vector<1x256xf32>
    %53 = arith.mulf %52, %5 : vector<1x256xf32>
    %54 = arith.addf %50, %53 : vector<1x256xf32>
    %55 = vector.extract_strided_slice %45 {offsets = [2, 0], sizes = [1, 256], strides = [1, 1]} : vector<16x256xf32> to vector<1x256xf32>
    %c15_i32 = arith.constant 15 : i32
    %56 = tpu.dynamic_rotate %55 by %c15_i32 dim 1 : vector<1x256xf32>, i32 -> vector<1x256xf32>
    %57 = arith.mulf %56, %6 : vector<1x256xf32>
    %58 = arith.addf %54, %57 : vector<1x256xf32>
    %59 = vector.extract_strided_slice %45 {offsets = [3, 0], sizes = [1, 256], strides = [1, 1]} : vector<16x256xf32> to vector<1x256xf32>
    %c1_i32_22 = arith.constant 1 : i32
    %60 = tpu.dynamic_rotate %59 by %c1_i32_22 dim 1 : vector<1x256xf32>, i32 -> vector<1x256xf32>
    %61 = arith.mulf %60, %7 : vector<1x256xf32>
    %62 = arith.addf %58, %61 : vector<1x256xf32>
    %63 = vector.extract_strided_slice %45 {offsets = [5, 0], sizes = [1, 256], strides = [1, 1]} : vector<16x256xf32> to vector<1x256xf32>
    %c255_i32_23 = arith.constant 255 : i32
    %64 = tpu.dynamic_rotate %63 by %c255_i32_23 dim 1 : vector<1x256xf32>, i32 -> vector<1x256xf32>
    %65 = arith.mulf %64, %8 : vector<1x256xf32>
    %66 = arith.addf %62, %65 : vector<1x256xf32>
    %67 = vector.extract_strided_slice %45 {offsets = [6, 0], sizes = [1, 256], strides = [1, 1]} : vector<16x256xf32> to vector<1x256xf32>
    %c241_i32 = arith.constant 241 : i32
    %68 = tpu.dynamic_rotate %67 by %c241_i32 dim 1 : vector<1x256xf32>, i32 -> vector<1x256xf32>
    %69 = arith.mulf %68, %9 : vector<1x256xf32>
    %70 = arith.addf %66, %69 : vector<1x256xf32>
    %71 = vector.extract_strided_slice %45 {offsets = [7, 0], sizes = [1, 256], strides = [1, 1]} : vector<16x256xf32> to vector<1x256xf32>
    %c240_i32_24 = arith.constant 240 : i32
    %72 = tpu.dynamic_rotate %71 by %c240_i32_24 dim 1 : vector<1x256xf32>, i32 -> vector<1x256xf32>
    %73 = arith.mulf %72, %10 : vector<1x256xf32>
    %74 = arith.addf %70, %73 : vector<1x256xf32>
    %75 = vector.extract_strided_slice %45 {offsets = [8, 0], sizes = [1, 256], strides = [1, 1]} : vector<16x256xf32> to vector<1x256xf32>
    %c239_i32 = arith.constant 239 : i32
    %76 = tpu.dynamic_rotate %75 by %c239_i32 dim 1 : vector<1x256xf32>, i32 -> vector<1x256xf32>
    %77 = arith.mulf %76, %11 : vector<1x256xf32>
    %78 = arith.addf %74, %77 : vector<1x256xf32>
    %79 = vector.broadcast %3 : vector<1x1xf32> to vector<1x256xf32>
    %80 = arith.addf %78, %79 : vector<1x256xf32>
    %81 = arith.negf %80 : vector<1x256xf32>
    %82 = math.exp %81 : vector<1x256xf32>
    %cst_25 = arith.constant 1.000000e+00 : f32
    %83 = vector.broadcast %cst_25 : f32 to vector<1x256xf32>
    %84 = arith.addf %83, %82 : vector<1x256xf32>
    %85 = arith.divf %83, %84 : vector<1x256xf32>
    %c0_26 = arith.constant 0 : index
    %c0_27 = arith.constant 0 : index
    %c0_28 = arith.constant 0 : index
    %86 = vector.load %arg7[%c0_26, %c0_27, %c0_28] : memref<2x1x256xf32, #tpu.memory_space<vmem>>, vector<1x1x256xf32>
    %87 = vector.shape_cast %86 : vector<1x1x256xf32> to vector<1x256xf32>
    %88 = vector.shape_cast %85 : vector<1x256xf32> to vector<1x1x256xf32>
    tpu.vector_store %arg7[%c0_26, %c0_27, %c0_28], %88 {strides = array<i32>} : memref<2x1x256xf32, #tpu.memory_space<vmem>>, vector<1x1x256xf32>,
    %c1_29 = arith.constant 1 : index
    %c0_30 = arith.constant 0 : index
    %c0_31 = arith.constant 0 : index
    %89 = vector.load %arg1[%c1_29, %c0_30, %c0_31] : memref<2x128x256xf32, #tpu.memory_space<vmem>>, vector<1x128x256xf32>
    %90 = vector.shape_cast %89 : vector<1x128x256xf32> to vector<128x256xf32>
    %91 = arith.truncf %90 : vector<128x256xf32> to vector<128x256xbf16>
    %c16_i32_32 = arith.constant 16 : i32
    %92 = tpu.dynamic_rotate %90 by %c16_i32_32 dim 1 : vector<128x256xf32>, i32 -> vector<128x256xf32>
    %93 = arith.mulf %92, %13 : vector<128x256xf32>
    %94 = arith.truncf %93 : vector<128x256xf32> to vector<128x256xbf16>
    %c240_i32_33 = arith.constant 240 : i32
    %95 = tpu.dynamic_rotate %90 by %c240_i32_33 dim 1 : vector<128x256xf32>, i32 -> vector<128x256xf32>
    %96 = arith.mulf %95, %15 : vector<128x256xf32>
    %97 = arith.truncf %96 : vector<128x256xf32> to vector<128x256xbf16>
    %98 = tpu.concatenate %94, %91, %97 in 0 : vector<128x256xbf16>, vector<128x256xbf16>, vector<128x256xbf16> -> vector<384x256xbf16>
    %cst_34 = arith.constant dense<0.000000e+00> : vector<192x256xf32>
    %99 = tpu.matmul %0, %98, %cst_34 {dimension_numbers = #tpu.dot_dimension_numbers<[1], [0], [0], [1], [0, 0, 1, 1], [], []>} : vector<192x384xbf16>, vector<384x256xbf16>, vector<192x256xf32> -> vector<192x256xf32>
    %100 = vector.extract_strided_slice %99 {offsets = [64, 0], sizes = [64, 256], strides = [1, 1]} : vector<192x256xf32> to vector<64x256xf32>
    %101 = vector.extract_strided_slice %99 {offsets = [0, 0], sizes = [64, 256], strides = [1, 1]} : vector<192x256xf32> to vector<64x256xf32>
    %c1_i32_35 = arith.constant 1 : i32
    %102 = tpu.dynamic_rotate %101 by %c1_i32_35 dim 1 : vector<64x256xf32>, i32 -> vector<64x256xf32>
    %103 = arith.mulf %102, %17 : vector<64x256xf32>
    %104 = arith.addf %100, %103 : vector<64x256xf32>
    %105 = vector.extract_strided_slice %99 {offsets = [128, 0], sizes = [64, 256], strides = [1, 1]} : vector<192x256xf32> to vector<64x256xf32>
    %c255_i32_36 = arith.constant 255 : i32
    %106 = tpu.dynamic_rotate %105 by %c255_i32_36 dim 1 : vector<64x256xf32>, i32 -> vector<64x256xf32>
    %107 = arith.mulf %106, %19 : vector<64x256xf32>
    %108 = arith.addf %104, %107 : vector<64x256xf32>
    %109 = vector.broadcast %2 : vector<64x1xf32> to vector<64x256xf32>
    %110 = arith.addf %108, %109 : vector<64x256xf32>
    %cst_37 = arith.constant 0.000000e+00 : f32
    %111 = vector.broadcast %cst_37 : f32 to vector<64x256xf32>
    %112 = arith.maximumf %110, %111 : vector<64x256xf32>
    %113 = arith.truncf %112 : vector<64x256xf32> to vector<64x256xbf16>
    %cst_38 = arith.constant dense<0.000000e+00> : vector<16x256xf32>
    %114 = tpu.matmul %1, %113, %cst_38 {dimension_numbers = #tpu.dot_dimension_numbers<[1], [0], [0], [1], [0, 0, 1, 1], [], []>} : vector<16x64xbf16>, vector<64x256xbf16>, vector<16x256xf32> -> vector<16x256xf32>
    %115 = vector.extract_strided_slice %114 {offsets = [4, 0], sizes = [1, 256], strides = [1, 1]} : vector<16x256xf32> to vector<1x256xf32>
    %116 = vector.extract_strided_slice %114 {offsets = [0, 0], sizes = [1, 256], strides = [1, 1]} : vector<16x256xf32> to vector<1x256xf32>
    %c17_i32_39 = arith.constant 17 : i32
    %117 = tpu.dynamic_rotate %116 by %c17_i32_39 dim 1 : vector<1x256xf32>, i32 -> vector<1x256xf32>
    %118 = arith.mulf %117, %4 : vector<1x256xf32>
    %119 = arith.addf %115, %118 : vector<1x256xf32>
    %120 = vector.extract_strided_slice %114 {offsets = [1, 0], sizes = [1, 256], strides = [1, 1]} : vector<16x256xf32> to vector<1x256xf32>
    %c16_i32_40 = arith.constant 16 : i32
    %121 = tpu.dynamic_rotate %120 by %c16_i32_40 dim 1 : vector<1x256xf32>, i32 -> vector<1x256xf32>
    %122 = arith.mulf %121, %5 : vector<1x256xf32>
    %123 = arith.addf %119, %122 : vector<1x256xf32>
    %124 = vector.extract_strided_slice %114 {offsets = [2, 0], sizes = [1, 256], strides = [1, 1]} : vector<16x256xf32> to vector<1x256xf32>
    %c15_i32_41 = arith.constant 15 : i32
    %125 = tpu.dynamic_rotate %124 by %c15_i32_41 dim 1 : vector<1x256xf32>, i32 -> vector<1x256xf32>
    %126 = arith.mulf %125, %6 : vector<1x256xf32>
    %127 = arith.addf %123, %126 : vector<1x256xf32>
    %128 = vector.extract_strided_slice %114 {offsets = [3, 0], sizes = [1, 256], strides = [1, 1]} : vector<16x256xf32> to vector<1x256xf32>
    %c1_i32_42 = arith.constant 1 : i32
    %129 = tpu.dynamic_rotate %128 by %c1_i32_42 dim 1 : vector<1x256xf32>, i32 -> vector<1x256xf32>
    %130 = arith.mulf %129, %7 : vector<1x256xf32>
    %131 = arith.addf %127, %130 : vector<1x256xf32>
    %132 = vector.extract_strided_slice %114 {offsets = [5, 0], sizes = [1, 256], strides = [1, 1]} : vector<16x256xf32> to vector<1x256xf32>
    %c255_i32_43 = arith.constant 255 : i32
    %133 = tpu.dynamic_rotate %132 by %c255_i32_43 dim 1 : vector<1x256xf32>, i32 -> vector<1x256xf32>
    %134 = arith.mulf %133, %8 : vector<1x256xf32>
    %135 = arith.addf %131, %134 : vector<1x256xf32>
    %136 = vector.extract_strided_slice %114 {offsets = [6, 0], sizes = [1, 256], strides = [1, 1]} : vector<16x256xf32> to vector<1x256xf32>
    %c241_i32_44 = arith.constant 241 : i32
    %137 = tpu.dynamic_rotate %136 by %c241_i32_44 dim 1 : vector<1x256xf32>, i32 -> vector<1x256xf32>
    %138 = arith.mulf %137, %9 : vector<1x256xf32>
    %139 = arith.addf %135, %138 : vector<1x256xf32>
    %140 = vector.extract_strided_slice %114 {offsets = [7, 0], sizes = [1, 256], strides = [1, 1]} : vector<16x256xf32> to vector<1x256xf32>
    %c240_i32_45 = arith.constant 240 : i32
    %141 = tpu.dynamic_rotate %140 by %c240_i32_45 dim 1 : vector<1x256xf32>, i32 -> vector<1x256xf32>
    %142 = arith.mulf %141, %10 : vector<1x256xf32>
    %143 = arith.addf %139, %142 : vector<1x256xf32>
    %144 = vector.extract_strided_slice %114 {offsets = [8, 0], sizes = [1, 256], strides = [1, 1]} : vector<16x256xf32> to vector<1x256xf32>
    %c239_i32_46 = arith.constant 239 : i32
    %145 = tpu.dynamic_rotate %144 by %c239_i32_46 dim 1 : vector<1x256xf32>, i32 -> vector<1x256xf32>
    %146 = arith.mulf %145, %11 : vector<1x256xf32>
    %147 = arith.addf %143, %146 : vector<1x256xf32>
    %148 = vector.broadcast %3 : vector<1x1xf32> to vector<1x256xf32>
    %149 = arith.addf %147, %148 : vector<1x256xf32>
    %150 = arith.negf %149 : vector<1x256xf32>
    %151 = math.exp %150 : vector<1x256xf32>
    %cst_47 = arith.constant 1.000000e+00 : f32
    %152 = vector.broadcast %cst_47 : f32 to vector<1x256xf32>
    %153 = arith.addf %152, %151 : vector<1x256xf32>
    %154 = arith.divf %152, %153 : vector<1x256xf32>
    %c1_48 = arith.constant 1 : index
    %c0_49 = arith.constant 0 : index
    %c0_50 = arith.constant 0 : index
    %155 = vector.load %arg7[%c1_48, %c0_49, %c0_50] : memref<2x1x256xf32, #tpu.memory_space<vmem>>, vector<1x1x256xf32>
    %156 = vector.shape_cast %155 : vector<1x1x256xf32> to vector<1x256xf32>
    %157 = vector.shape_cast %154 : vector<1x256xf32> to vector<1x1x256xf32>
    tpu.vector_store %arg7[%c1_48, %c0_49, %c0_50], %157 {strides = array<i32>} : memref<2x1x256xf32, #tpu.memory_space<vmem>>, vector<1x1x256xf32>,
    return
  }
  func.func @transform_0(%arg0: i32) -> (i32, i32, i32) {
    %c0_i32 = arith.constant 0 : i32
    %c0_i32_0 = arith.constant 0 : i32
    %c0_i32_1 = arith.constant 0 : i32
    return %arg0, %c0_i32, %c0_i32_0 : i32, i32, i32
  }
  func.func @transform_1(%arg0: i32) -> (i32, i32) {
    %c0_i32 = arith.constant 0 : i32
    %c0_i32_0 = arith.constant 0 : i32
    %c0_i32_1 = arith.constant 0 : i32
    return %c0_i32, %c0_i32_0 : i32, i32
  }
  func.func @transform_2(%arg0: i32) -> (i32, i32) {
    %c0_i32 = arith.constant 0 : i32
    %c0_i32_0 = arith.constant 0 : i32
    %c0_i32_1 = arith.constant 0 : i32
    return %c0_i32, %c0_i32_0 : i32, i32
  }
  func.func @transform_3(%arg0: i32) -> (i32, i32) {
    %c0_i32 = arith.constant 0 : i32
    %c0_i32_0 = arith.constant 0 : i32
    %c0_i32_1 = arith.constant 0 : i32
    return %c0_i32, %c0_i32_0 : i32, i32
  }
  func.func @transform_4(%arg0: i32) -> (i32, i32) {
    %c0_i32 = arith.constant 0 : i32
    %c0_i32_0 = arith.constant 0 : i32
    %c0_i32_1 = arith.constant 0 : i32
    return %c0_i32, %c0_i32_0 : i32, i32
  }
  func.func @transform_5(%arg0: i32) -> (i32, i32) {
    %c0_i32 = arith.constant 0 : i32
    %c0_i32_0 = arith.constant 0 : i32
    %c0_i32_1 = arith.constant 0 : i32
    return %c0_i32, %c0_i32_0 : i32, i32
  }
  func.func @transform_6(%arg0: i32) -> (i32, i32, i32) {
    %c0_i32 = arith.constant 0 : i32
    %c0_i32_0 = arith.constant 0 : i32
    %c0_i32_1 = arith.constant 0 : i32
    return %arg0, %c0_i32, %c0_i32_0 : i32, i32, i32
  }
}

</mosaic_0001>

<llo_original>
// kernel: tpu_custom_call.1
$region0: #{tpu_custom_call.1}
  #allocation0 [shape = 'u32[]', space=smem, size = 0x4, offset = 0x4, fixed_abs, tag = 'smem constant byte address 0x4 - core index']
  #allocation1 [shape = 'u32[144,128]{1,0:T(1,128)}', space=vmem, size = 0x12000, scoped, tag = 'internal scratch']
  #allocation2 [shape = 'f32[1,1]{1,0:T(1,128)S(1)}', space=vmem, size = 0x200, scoped, tag = 'scoped memory for tpu_custom_call.1']
  %s0 = inlined_call_operand.hbm [shape: f32[2,128,256], index: 0, kind: input, shape index: {}]
  %s1 = inlined_call_operand.hbm [shape: bf16[192,384], index: 1, kind: input, shape index: {}]
  %s2 = inlined_call_operand.vmem [shape: f32[64,1], index: 2, kind: input, shape index: {}]
  %s3 = inlined_call_operand.vmem [shape: bf16[16,64], index: 3, kind: input, shape index: {}]
  %s4 = inlined_call_operand.<no memory space> [shape: f32[1,1], index: 4, kind: input, shape index: {}]
  %s5 = inlined_call_operand.vmem [shape: f32[9,256], index: 5, kind: input, shape index: {}]
  %s6 = inlined_call_operand.hbm [shape: f32[2,1,256], index: 6, kind: output, shape index: {}]
  %s7 = sld [smem:[#allocation0]]
  $region42: #{tpu_custom_call.1} parent=0
    _
  %s9 = ssub.s32 1, %s7
  %s10 = scalar_select 0, %s9, %s7
  %v11 = vstv %s4
  %12 = vst [vmem:[#allocation2] sm:$0x1] %v11
  $region1: #{tpu_custom_call.1} parent=0
    #allocation3 [shape = 'u8[262144]{0}', space=vmem, size = 0x40000, scoped, tag = 'input window, operand 0, single buffered']
    #allocation4 [shape = 's32[1]{0}', space=sflag, size = 0x4, scoped, tag = 'scoped memory for tpu_custom_call.1']
    #allocation5 [shape = 's32[1]{0}', space=sflag, size = 0x4, scoped, tag = 'scoped memory for tpu_custom_call.1']
    #allocation6 [shape = 'u8[147456]{0}', space=vmem, size = 0x24000, scoped, tag = 'input window, operand 1, single buffered']
    #allocation7 [shape = 's32[1]{0}', space=sflag, size = 0x4, scoped, tag = 'scoped memory for tpu_custom_call.1']
    #allocation8 [shape = 'u8[2048]{0}', space=vmem, size = 0x800, scoped, tag = 'output window, operand 0, single buffered']
    %13 = vsyncpa [#allocation4], 0
    %14 = vsyncpa [#allocation7], 0
    %15 = vsyncpa [#allocation5], 0
    // Predicated region
    $region2: #{tpu_custom_call.1} parent=1 // pred_check
      _
    $region3: #{tpu_custom_call.1} parent=1 // pred_check_branch
      %17 = sbr.rel (0) target = $region5
    $region4: #{tpu_custom_call.1} parent=1 // pred_region
      %s19 = ssub.s32 8192, 8192
      %20 = vsyncadd [#allocation4], %s19
      %s21 = sshll.u32 [#allocation3], 4
      %s22 = int_to_ptr.vmem [resolvable:$true] %s21
      %27 = dma.hbm_to_vmem [thread:$0]  %s0, 8192, %s22, [#allocation4], 256, 256, 16
    $region5: #{tpu_custom_call.1} parent=1 // pred_fallthru
      _
    // Predicated region
    $region6: #{tpu_custom_call.1} parent=1 // pred_check
      _
    $region7: #{tpu_custom_call.1} parent=1 // pred_check_branch
      %29 = sbr.rel (0) target = $region9
    $region8: #{tpu_custom_call.1} parent=1 // pred_region
      %s31 = ssub.s32 4608, 4608
      %32 = vsyncadd [#allocation7], %s31
      %s33 = sshll.u32 [#allocation6], 4
      %s34 = int_to_ptr.vmem [resolvable:$true] %s33
      %39 = dma.hbm_to_vmem [thread:$0]  %s1, 4608, %s34, [#allocation7], 192, 192, 12
    $region9: #{tpu_custom_call.1} parent=1 // pred_fallthru
      _
    // Predicated region
    $region10: #{tpu_custom_call.1} parent=1 // pred_check
      _
    $region11: #{tpu_custom_call.1} parent=1 // pred_check_branch
      %41 = sbr.rel (0) target = $region13
    $region12: #{tpu_custom_call.1} parent=1 // pred_region
      _
    $region13: #{tpu_custom_call.1} parent=1 // pred_fallthru
      _
    // Predicated region
    $region14: #{tpu_custom_call.1} parent=1 // pred_check
      _
    $region15: #{tpu_custom_call.1} parent=1 // pred_check_branch
      %43 = sbr.rel (0) target = $region17
    $region16: #{tpu_custom_call.1} parent=1 // pred_region
      _
    $region17: #{tpu_custom_call.1} parent=1 // pred_fallthru
      _
    // Predicated region
    $region18: #{tpu_custom_call.1} parent=1 // pred_check
      _
    $region19: #{tpu_custom_call.1} parent=1 // pred_check_branch
      %45 = sbr.rel (0) target = $region21
    $region20: #{tpu_custom_call.1} parent=1 // pred_region
      _
    $region21: #{tpu_custom_call.1} parent=1 // pred_fallthru
      _
    // Predicated region
    $region22: #{tpu_custom_call.1} parent=1 // pred_check
      _
    $region23: #{tpu_custom_call.1} parent=1 // pred_check_branch
      %47 = sbr.rel (0) target = $region25
    $region24: #{tpu_custom_call.1} parent=1 // pred_region
      _
    $region25: #{tpu_custom_call.1} parent=1 // pred_fallthru
      _
    // Predicated region
    $region26: #{tpu_custom_call.1} parent=1 // pred_check
      _
    $region27: #{tpu_custom_call.1} parent=1 // pred_check_branch
      %49 = sbr.rel (0) target = $region29
    $region28: #{tpu_custom_call.1} parent=1 // pred_region
      %50 = dma.done [#allocation4], 8192
    $region29: #{tpu_custom_call.1} parent=1 // pred_fallthru
      _
    // Predicated region
    $region30: #{tpu_custom_call.1} parent=1 // pred_check
      _
    $region31: #{tpu_custom_call.1} parent=1 // pred_check_branch
      %52 = sbr.rel (0) target = $region33
    $region32: #{tpu_custom_call.1} parent=1 // pred_region
      %53 = dma.done [#allocation7], 4608
    $region33: #{tpu_custom_call.1} parent=1 // pred_fallthru
      _
    %v55 = vld [vmem:[#allocation6] sm:$0xff]
    %v56 = vld [vmem:[#allocation6 + $0x8] sm:$0xf]
    %v57 = vld [vmem:[#allocation6 + $0xc] sm:$0xff]
    %v58 = vld [vmem:[#allocation6 + $0x14] sm:$0xf]
    %v59 = vld [vmem:[#allocation6 + $0x18] sm:$0xff]
    %v60 = vld [vmem:[#allocation6 + $0x20] sm:$0xf]
    %v61 = vld [vmem:[#allocation6 + $0x24] sm:$0xff]
    %v62 = vld [vmem:[#allocation6 + $0x2c] sm:$0xf]
    %v63 = vld [vmem:[#allocation6 + $0x30] sm:$0xff]
    %v64 = vld [vmem:[#allocation6 + $0x38] sm:$0xf]
    %v65 = vld [vmem:[#allocation6 + $0x3c] sm:$0xff]
    %v66 = vld [vmem:[#allocation6 + $0x44] sm:$0xf]
    %v67 = vld [vmem:[#allocation6 + $0x48] sm:$0xff]
    %v68 = vld [vmem:[#allocation6 + $0x50] sm:$0xf]
    %v69 = vld [vmem:[#allocation6 + $0x54] sm:$0xff]
    %v70 = vld [vmem:[#allocation6 + $0x5c] sm:$0xf]
    %v71 = vld [vmem:[#allocation6 + $0x60] sm:$0xff]
    %v72 = vld [vmem:[#allocation6 + $0x68] sm:$0xf]
    %v73 = vld [vmem:[#allocation6 + $0x6c] sm:$0xff]
    %v74 = vld [vmem:[#allocation6 + $0x74] sm:$0xf]
    %v75 = vld [vmem:[#allocation6 + $0x78] sm:$0xff]
    %v76 = vld [vmem:[#allocation6 + $0x80] sm:$0xf]
    %v77 = vld [vmem:[#allocation6 + $0x84] sm:$0xff]
    %v78 = vld [vmem:[#allocation6 + $0x8c] sm:$0xf]
    %v79 = vld [vmem:[#allocation6 + $0x90] sm:$0xff]
    %v80 = vld [vmem:[#allocation6 + $0x98] sm:$0xf]
    %v81 = vld [vmem:[#allocation6 + $0x9c] sm:$0xff]
    %v82 = vld [vmem:[#allocation6 + $0xa4] sm:$0xf]
    %v83 = vld [vmem:[#allocation6 + $0xa8] sm:$0xff]
    %v84 = vld [vmem:[#allocation6 + $0xb0] sm:$0xf]
    %v85 = vld [vmem:[#allocation6 + $0xb4] sm:$0xff]
    %v86 = vld [vmem:[#allocation6 + $0xbc] sm:$0xf]
    %v87 = vld [vmem:[#allocation6 + $0xc0] sm:$0xff]
    %v88 = vld [vmem:[#allocation6 + $0xc8] sm:$0xf]
    %v89 = vld [vmem:[#allocation6 + $0xcc] sm:$0xff]
    %v90 = vld [vmem:[#allocation6 + $0xd4] sm:$0xf]
    %v91 = vld [vmem:[#allocation6 + $0xd8] sm:$0xff]
    %v92 = vld [vmem:[#allocation6 + $0xe0] sm:$0xf]
    %v93 = vld [vmem:[#allocation6 + $0xe4] sm:$0xff]
    %v94 = vld [vmem:[#allocation6 + $0xec] sm:$0xf]
    %v95 = vld [vmem:[#allocation6 + $0xf0] sm:$0xff]
    %v96 = vld [vmem:[#allocation6 + $0xf8] sm:$0xf]
    %v97 = vld [vmem:[#allocation6 + $0xfc] sm:$0xff]
    %v98 = vld [vmem:[#allocation6 + $0x104] sm:$0xf]
    %v99 = vld [vmem:[#allocation6 + $0x108] sm:$0xff]
    %v100 = vld [vmem:[#allocation6 + $0x110] sm:$0xf]
    %v101 = vld [vmem:[#allocation6 + $0x114] sm:$0xff]
    %v102 = vld [vmem:[#allocation6 + $0x11c] sm:$0xf]
    %v103 = vld [vmem:[%s3] sm:$0xf]
    %v104 = vld [vmem:[%s3 + $0x4] sm:$0xf]
    %v105 = vld [vmem:[%s2] sm:$0xff]
    %v106 = vld [vmem:[%s2 + $0x8] sm:$0xff]
    %v107 = vld [vmem:[%s2 + $0x10] sm:$0xff]
    %v108 = vld [vmem:[%s2 + $0x18] sm:$0xff]
    %v109 = vld [vmem:[%s2 + $0x20] sm:$0xff]
    %v110 = vld [vmem:[%s2 + $0x28] sm:$0xff]
    %v111 = vld [vmem:[%s2 + $0x30] sm:$0xff]
    %v112 = vld [vmem:[%s2 + $0x38] sm:$0xff]
    %v113 = vld [vmem:[#allocation2] sm:$0x1]
    %v114 = vld [vmem:[%s5] ss:$8 sm:$0x3]
    %s115 = scalar_lea.vmem %s5, 1
    %v116 = vld [vmem:[%s115] ss:$8 sm:$0x3]
    %s117 = scalar_lea.vmem %s5, 2
    %v118 = vld [vmem:[%s117] ss:$8 sm:$0x3]
    %s119 = scalar_lea.vmem %s5, 3
    %v120 = vld [vmem:[%s119] ss:$8 sm:$0x3]
    %s121 = scalar_lea.vmem %s5, 5
    %v122 = vld [vmem:[%s121] ss:$8 sm:$0x3]
    %s123 = scalar_lea.vmem %s5, 6
    %v124 = vld [vmem:[%s123] ss:$8 sm:$0x3]
    %s125 = scalar_lea.vmem %s5, 7
    %v126 = vld [vmem:[%s125] ss:$8 sm:$0x3]
    %s127 = scalar_lea.vmem %s5, 16
    %v128 = vld [vmem:[%s127] ss:$8 sm:$0x3]
    %v130 = vlaneseq
    %v131 = vshrl.u32 %v130, 7
    %v132 = vsub.s32 0, %v131
    %v133 = vrot.slane %v116, %v132
    %v134 = vlaneseq
    %v135 = vshrl.u32 %v134, 7
    %v136 = vsub.s32 1, %v135
    %v137 = vrot.slane %v116, %v136
    %v141 = vlaneseq
    %v142 = vshrl.u32 %v141, 7
    %v143 = vsub.s32 0, %v142
    %v144 = vrot.slane %v126, %v143
    %v145 = vlaneseq
    %v146 = vshrl.u32 %v145, 7
    %v147 = vsub.s32 1, %v146
    %v148 = vrot.slane %v126, %v147
    %v152 = vlaneseq
    %v153 = vshrl.u32 %v152, 7
    %v154 = vsub.s32 0, %v153
    %v155 = vrot.slane %v120, %v154
    %v156 = vlaneseq
    %v157 = vshrl.u32 %v156, 7
    %v158 = vsub.s32 1, %v157
    %v159 = vrot.slane %v120, %v158
    %v163 = vlaneseq
    %v164 = vshrl.u32 %v163, 7
    %v165 = vsub.s32 0, %v164
    %v166 = vrot.slane %v122, %v165
    %v167 = vlaneseq
    %v168 = vshrl.u32 %v167, 7
    %v169 = vsub.s32 1, %v168
    %v170 = vrot.slane %v122, %v169
    %v173 = vld [vmem:[#allocation3] sm:$0xff]
    %v174 = vld [vmem:[#allocation3 + $0x8] sm:$0xff]
    %v175 = vld [vmem:[#allocation3 + $0x10] sm:$0xff]
    %v176 = vld [vmem:[#allocation3 + $0x18] sm:$0xff]
    %v177 = vld [vmem:[#allocation3 + $0x20] sm:$0xff]
    %v178 = vld [vmem:[#allocation3 + $0x28] sm:$0xff]
    %v179 = vld [vmem:[#allocation3 + $0x30] sm:$0xff]
    %v180 = vld [vmem:[#allocation3 + $0x38] sm:$0xff]
    %v181 = vld [vmem:[#allocation3 + $0x40] sm:$0xff]
    %v182 = vld [vmem:[#allocation3 + $0x48] sm:$0xff]
    %v183 = vld [vmem:[#allocation3 + $0x50] sm:$0xff]
    %v184 = vld [vmem:[#allocation3 + $0x58] sm:$0xff]
    %v185 = vld [vmem:[#allocation3 + $0x60] sm:$0xff]
    %v186 = vld [vmem:[#allocation3 + $0x68] sm:$0xff]
    %v187 = vld [vmem:[#allocation3 + $0x70] sm:$0xff]
    %v188 = vld [vmem:[#allocation3 + $0x78] sm:$0xff]
    %v189 = vld [vmem:[#allocation3 + $0x80] sm:$0xff]
    %v190 = vld [vmem:[#allocation3 + $0x88] sm:$0xff]
    %v191 = vld [vmem:[#allocation3 + $0x90] sm:$0xff]
    %v192 = vld [vmem:[#allocation3 + $0x98] sm:$0xff]
    %v193 = vld [vmem:[#allocation3 + $0xa0] sm:$0xff]
    %v194 = vld [vmem:[#allocation3 + $0xa8] sm:$0xff]
    %v195 = vld [vmem:[#allocation3 + $0xb0] sm:$0xff]
    %v196 = vld [vmem:[#allocation3 + $0xb8] sm:$0xff]
    %v197 = vld [vmem:[#allocation3 + $0xc0] sm:$0xff]
    %v198 = vld [vmem:[#allocation3 + $0xc8] sm:$0xff]
    %v199 = vld [vmem:[#allocation3 + $0xd0] sm:$0xff]
    %v200 = vld [vmem:[#allocation3 + $0xd8] sm:$0xff]
    %v201 = vld [vmem:[#allocation3 + $0xe0] sm:$0xff]
    %v202 = vld [vmem:[#allocation3 + $0xe8] sm:$0xff]
    %v203 = vld [vmem:[#allocation3 + $0xf0] sm:$0xff]
    %v204 = vld [vmem:[#allocation3 + $0xf8] sm:$0xff]
    %v205 = vpack.c.bf16 %v175, %v173
    %v206 = vpack.c.bf16 %v176, %v174
    %v207 = vpack.c.bf16 %v179, %v177
    %v208 = vpack.c.bf16 %v180, %v178
    %v209 = vpack.c.bf16 %v183, %v181
    %v210 = vpack.c.bf16 %v184, %v182
    %v211 = vpack.c.bf16 %v187, %v185
    %v212 = vpack.c.bf16 %v188, %v186
    %v213 = vpack.c.bf16 %v191, %v189
    %v214 = vpack.c.bf16 %v192, %v190
    %v215 = vpack.c.bf16 %v195, %v193
    %v216 = vpack.c.bf16 %v196, %v194
    %v217 = vpack.c.bf16 %v199, %v197
    %v218 = vpack.c.bf16 %v200, %v198
    %v219 = vpack.c.bf16 %v203, %v201
    %v220 = vpack.c.bf16 %v204, %v202
    %221 = vrot.lane.b32.xlu0 %v173, 16
    %v222 = vpop.permute.xlu0 %221
    %223 = vrot.lane.b32.xlu0 %v175, 16
    %v224 = vpop.permute.xlu0 %223
    %225 = vrot.lane.b32.xlu0 %v177, 16
    %v226 = vpop.permute.xlu0 %225
    %227 = vrot.lane.b32.xlu0 %v179, 16
    %v228 = vpop.permute.xlu0 %227
    %229 = vrot.lane.b32.xlu0 %v181, 16
    %v230 = vpop.permute.xlu0 %229
    %231 = vrot.lane.b32.xlu0 %v183, 16
    %v232 = vpop.permute.xlu0 %231
    %233 = vrot.lane.b32.xlu0 %v185, 16
    %v234 = vpop.permute.xlu0 %233
    %235 = vrot.lane.b32.xlu0 %v187, 16
    %v236 = vpop.permute.xlu0 %235
    %237 = vrot.lane.b32.xlu0 %v189, 16
    %v238 = vpop.permute.xlu0 %237
    %239 = vrot.lane.b32.xlu0 %v191, 16
    %v240 = vpop.permute.xlu0 %239
    %241 = vrot.lane.b32.xlu0 %v193, 16
    %v242 = vpop.permute.xlu0 %241
    %243 = vrot.lane.b32.xlu0 %v195, 16
    %v244 = vpop.permute.xlu0 %243
    %245 = vrot.lane.b32.xlu0 %v197, 16
    %v246 = vpop.permute.xlu0 %245
    %247 = vrot.lane.b32.xlu0 %v199, 16
    %v248 = vpop.permute.xlu0 %247
    %249 = vrot.lane.b32.xlu0 %v201, 16
    %v250 = vpop.permute.xlu0 %249
    %251 = vrot.lane.b32.xlu0 %v203, 16
    %v252 = vpop.permute.xlu0 %251
    %253 = vrot.lane.b32.xlu0 %v174, 16
    %v254 = vpop.permute.xlu0 %253
    %255 = vrot.lane.b32.xlu0 %v176, 16
    %v256 = vpop.permute.xlu0 %255
    %257 = vrot.lane.b32.xlu0 %v178, 16
    %v258 = vpop.permute.xlu0 %257
    %259 = vrot.lane.b32.xlu0 %v180, 16
    %v260 = vpop.permute.xlu0 %259
    %261 = vrot.lane.b32.xlu0 %v182, 16
    %v262 = vpop.permute.xlu0 %261
    %263 = vrot.lane.b32.xlu0 %v184, 16
    %v264 = vpop.permute.xlu0 %263
    %265 = vrot.lane.b32.xlu0 %v186, 16
    %v266 = vpop.permute.xlu0 %265
    %267 = vrot.lane.b32.xlu0 %v188, 16
    %v268 = vpop.permute.xlu0 %267
    %269 = vrot.lane.b32.xlu0 %v190, 16
    %v270 = vpop.permute.xlu0 %269
    %271 = vrot.lane.b32.xlu0 %v192, 16
    %v272 = vpop.permute.xlu0 %271
    %273 = vrot.lane.b32.xlu0 %v194, 16
    %v274 = vpop.permute.xlu0 %273
    %275 = vrot.lane.b32.xlu0 %v196, 16
    %v276 = vpop.permute.xlu0 %275
    %277 = vrot.lane.b32.xlu0 %v198, 16
    %v278 = vpop.permute.xlu0 %277
    %279 = vrot.lane.b32.xlu0 %v200, 16
    %v280 = vpop.permute.xlu0 %279
    %281 = vrot.lane.b32.xlu0 %v202, 16
    %v282 = vpop.permute.xlu0 %281
    %283 = vrot.lane.b32.xlu0 %v204, 16
    %v284 = vpop.permute.xlu0 %283
    %v285 = vlaneseq
    %v286 = vand.u32 %v285, 127
    %vm287 = vcmp.lt.s32.totalorder %v286, 16
    %v288 = vsel %vm287, %v222, %v254
    %v289 = vsel %vm287, %v224, %v256
    %v290 = vsel %vm287, %v226, %v258
    %v291 = vsel %vm287, %v228, %v260
    %v292 = vsel %vm287, %v230, %v262
    %v293 = vsel %vm287, %v232, %v264
    %v294 = vsel %vm287, %v234, %v266
    %v295 = vsel %vm287, %v236, %v268
    %v296 = vsel %vm287, %v238, %v270
    %v297 = vsel %vm287, %v240, %v272
    %v298 = vsel %vm287, %v242, %v274
    %v299 = vsel %vm287, %v244, %v276
    %v300 = vsel %vm287, %v246, %v278
    %v301 = vsel %vm287, %v248, %v280
    %v302 = vsel %vm287, %v250, %v282
    %v303 = vsel %vm287, %v252, %v284
    %v304 = vsel %vm287, %v254, %v222
    %v305 = vsel %vm287, %v256, %v224
    %v306 = vsel %vm287, %v258, %v226
    %v307 = vsel %vm287, %v260, %v228
    %v308 = vsel %vm287, %v262, %v230
    %v309 = vsel %vm287, %v264, %v232
    %v310 = vsel %vm287, %v266, %v234
    %v311 = vsel %vm287, %v268, %v236
    %v312 = vsel %vm287, %v270, %v238
    %v313 = vsel %vm287, %v272, %v240
    %v314 = vsel %vm287, %v274, %v242
    %v315 = vsel %vm287, %v276, %v244
    %v316 = vsel %vm287, %v278, %v246
    %v317 = vsel %vm287, %v280, %v248
    %v318 = vsel %vm287, %v282, %v250
    %v319 = vsel %vm287, %v284, %v252
    %v320 = vmul.f32 %v304, %v133
    %v321 = vmul.f32 %v288, %v137
    %v322 = vmul.f32 %v305, %v133
    %v323 = vmul.f32 %v289, %v137
    %v324 = vmul.f32 %v306, %v133
    %v325 = vmul.f32 %v290, %v137
    %v326 = vmul.f32 %v307, %v133
    %v327 = vmul.f32 %v291, %v137
    %v328 = vmul.f32 %v308, %v133
    %v329 = vmul.f32 %v292, %v137
    %v330 = vmul.f32 %v309, %v133
    %v331 = vmul.f32 %v293, %v137
    %v332 = vmul.f32 %v310, %v133
    %v333 = vmul.f32 %v294, %v137
    %v334 = vmul.f32 %v311, %v133
    %v335 = vmul.f32 %v295, %v137
    %v336 = vmul.f32 %v312, %v133
    %v337 = vmul.f32 %v296, %v137
    %v338 = vmul.f32 %v313, %v133
    %v339 = vmul.f32 %v297, %v137
    %v340 = vmul.f32 %v314, %v133
    %v341 = vmul.f32 %v298, %v137
    %v342 = vmul.f32 %v315, %v133
    %v343 = vmul.f32 %v299, %v137
    %v344 = vmul.f32 %v316, %v133
    %v345 = vmul.f32 %v300, %v137
    %v346 = vmul.f32 %v317, %v133
    %v347 = vmul.f32 %v301, %v137
    %v348 = vmul.f32 %v318, %v133
    %v349 = vmul.f32 %v302, %v137
    %v350 = vmul.f32 %v319, %v133
    %v351 = vmul.f32 %v303, %v137
    %v352 = vpack.c.bf16 %v322, %v320
    %v353 = vpack.c.bf16 %v323, %v321
    %v354 = vpack.c.bf16 %v326, %v324
    %v355 = vpack.c.bf16 %v327, %v325
    %v356 = vpack.c.bf16 %v330, %v328
    %v357 = vpack.c.bf16 %v331, %v329
    %v358 = vpack.c.bf16 %v334, %v332
    %v359 = vpack.c.bf16 %v335, %v333
    %v360 = vpack.c.bf16 %v338, %v336
    %v361 = vpack.c.bf16 %v339, %v337
    %v362 = vpack.c.bf16 %v342, %v340
    %v363 = vpack.c.bf16 %v343, %v341
    %v364 = vpack.c.bf16 %v346, %v344
    %v365 = vpack.c.bf16 %v347, %v345
    %v366 = vpack.c.bf16 %v350, %v348
    %v367 = vpack.c.bf16 %v351, %v349
    %368 = vrot.lane.b32.xlu0 %v173, 112
    %v369 = vpop.permute.xlu0 %368
    %370 = vrot.lane.b32.xlu0 %v175, 112
    %v371 = vpop.permute.xlu0 %370
    %372 = vrot.lane.b32.xlu0 %v177, 112
    %v373 = vpop.permute.xlu0 %372
    %374 = vrot.lane.b32.xlu0 %v179, 112
    %v375 = vpop.permute.xlu0 %374
    %376 = vrot.lane.b32.xlu0 %v181, 112
    %v377 = vpop.permute.xlu0 %376
    %378 = vrot.lane.b32.xlu0 %v183, 112
    %v379 = vpop.permute.xlu0 %378
    %380 = vrot.lane.b32.xlu0 %v185, 112
    %v381 = vpop.permute.xlu0 %380
    %382 = vrot.lane.b32.xlu0 %v187, 112
    %v383 = vpop.permute.xlu0 %382
    %384 = vrot.lane.b32.xlu0 %v189, 112
    %v385 = vpop.permute.xlu0 %384
    %386 = vrot.lane.b32.xlu0 %v191, 112
    %v387 = vpop.permute.xlu0 %386
    %388 = vrot.lane.b32.xlu0 %v193, 112
    %v389 = vpop.permute.xlu0 %388
    %390 = vrot.lane.b32.xlu0 %v195, 112
    %v391 = vpop.permute.xlu0 %390
    %392 = vrot.lane.b32.xlu0 %v197, 112
    %v393 = vpop.permute.xlu0 %392
    %394 = vrot.lane.b32.xlu0 %v199, 112
    %v395 = vpop.permute.xlu0 %394
    %396 = vrot.lane.b32.xlu0 %v201, 112
    %v397 = vpop.permute.xlu0 %396
    %398 = vrot.lane.b32.xlu0 %v203, 112
    %v399 = vpop.permute.xlu0 %398
    %400 = vrot.lane.b32.xlu0 %v174, 112
    %v401 = vpop.permute.xlu0 %400
    %402 = vrot.lane.b32.xlu0 %v176, 112
    %v403 = vpop.permute.xlu0 %402
    %404 = vrot.lane.b32.xlu0 %v178, 112
    %v405 = vpop.permute.xlu0 %404
    %406 = vrot.lane.b32.xlu0 %v180, 112
    %v407 = vpop.permute.xlu0 %406
    %408 = vrot.lane.b32.xlu0 %v182, 112
    %v409 = vpop.permute.xlu0 %408
    %410 = vrot.lane.b32.xlu0 %v184, 112
    %v411 = vpop.permute.xlu0 %410
    %412 = vrot.lane.b32.xlu0 %v186, 112
    %v413 = vpop.permute.xlu0 %412
    %414 = vrot.lane.b32.xlu0 %v188, 112
    %v415 = vpop.permute.xlu0 %414
    %416 = vrot.lane.b32.xlu0 %v190, 112
    %v417 = vpop.permute.xlu0 %416
    %418 = vrot.lane.b32.xlu0 %v192, 112
    %v419 = vpop.permute.xlu0 %418
    %420 = vrot.lane.b32.xlu0 %v194, 112
    %v421 = vpop.permute.xlu0 %420
    %422 = vrot.lane.b32.xlu0 %v196, 112
    %v423 = vpop.permute.xlu0 %422
    %424 = vrot.lane.b32.xlu0 %v198, 112
    %v425 = vpop.permute.xlu0 %424
    %426 = vrot.lane.b32.xlu0 %v200, 112
    %v427 = vpop.permute.xlu0 %426
    %428 = vrot.lane.b32.xlu0 %v202, 112
    %v429 = vpop.permute.xlu0 %428
    %430 = vrot.lane.b32.xlu0 %v204, 112
    %v431 = vpop.permute.xlu0 %430
    %vm432 = vcmp.lt.s32.totalorder %v286, 112
    %v433 = vsel %vm432, %v369, %v401
    %v434 = vsel %vm432, %v371, %v403
    %v435 = vsel %vm432, %v373, %v405
    %v436 = vsel %vm432, %v375, %v407
    %v437 = vsel %vm432, %v377, %v409
    %v438 = vsel %vm432, %v379, %v411
    %v439 = vsel %vm432, %v381, %v413
    %v440 = vsel %vm432, %v383, %v415
    %v441 = vsel %vm432, %v385, %v417
    %v442 = vsel %vm432, %v387, %v419
    %v443 = vsel %vm432, %v389, %v421
    %v444 = vsel %vm432, %v391, %v423
    %v445 = vsel %vm432, %v393, %v425
    %v446 = vsel %vm432, %v395, %v427
    %v447 = vsel %vm432, %v397, %v429
    %v448 = vsel %vm432, %v399, %v431
    %v449 = vsel %vm432, %v401, %v369
    %v450 = vsel %vm432, %v403, %v371
    %v451 = vsel %vm432, %v405, %v373
    %v452 = vsel %vm432, %v407, %v375
    %v453 = vsel %vm432, %v409, %v377
    %v454 = vsel %vm432, %v411, %v379
    %v455 = vsel %vm432, %v413, %v381
    %v456 = vsel %vm432, %v415, %v383
    %v457 = vsel %vm432, %v417, %v385
    %v458 = vsel %vm432, %v419, %v387
    %v459 = vsel %vm432, %v421, %v389
    %v460 = vsel %vm432, %v423, %v391
    %v461 = vsel %vm432, %v425, %v393
    %v462 = vsel %vm432, %v427, %v395
    %v463 = vsel %vm432, %v429, %v397
    %v464 = vsel %vm432, %v431, %v399
    %v465 = vmul.f32 %v433, %v144
    %v466 = vmul.f32 %v449, %v148
    %v467 = vmul.f32 %v434, %v144
    %v468 = vmul.f32 %v450, %v148
    %v469 = vmul.f32 %v435, %v144
    %v470 = vmul.f32 %v451, %v148
    %v471 = vmul.f32 %v436, %v144
    %v472 = vmul.f32 %v452, %v148
    %v473 = vmul.f32 %v437, %v144
    %v474 = vmul.f32 %v453, %v148
    %v475 = vmul.f32 %v438, %v144
    %v476 = vmul.f32 %v454, %v148
    %v477 = vmul.f32 %v439, %v144
    %v478 = vmul.f32 %v455, %v148
    %v479 = vmul.f32 %v440, %v144
    %v480 = vmul.f32 %v456, %v148
    %v481 = vmul.f32 %v441, %v144
    %v482 = vmul.f32 %v457, %v148
    %v483 = vmul.f32 %v442, %v144
    %v484 = vmul.f32 %v458, %v148
    %v485 = vmul.f32 %v443, %v144
    %v486 = vmul.f32 %v459, %v148
    %v487 = vmul.f32 %v444, %v144
    %v488 = vmul.f32 %v460, %v148
    %v489 = vmul.f32 %v445, %v144
    %v490 = vmul.f32 %v461, %v148
    %v491 = vmul.f32 %v446, %v144
    %v492 = vmul.f32 %v462, %v148
    %v493 = vmul.f32 %v447, %v144
    %v494 = vmul.f32 %v463, %v148
    %v495 = vmul.f32 %v448, %v144
    %v496 = vmul.f32 %v464, %v148
    %v497 = vpack.c.bf16 %v467, %v465
    %v498 = vpack.c.bf16 %v468, %v466
    %v499 = vpack.c.bf16 %v471, %v469
    %v500 = vpack.c.bf16 %v472, %v470
    %v501 = vpack.c.bf16 %v475, %v473
    %v502 = vpack.c.bf16 %v476, %v474
    %v503 = vpack.c.bf16 %v479, %v477
    %v504 = vpack.c.bf16 %v480, %v478
    %v505 = vpack.c.bf16 %v483, %v481
    %v506 = vpack.c.bf16 %v484, %v482
    %v507 = vpack.c.bf16 %v487, %v485
    %v508 = vpack.c.bf16 %v488, %v486
    %v509 = vpack.c.bf16 %v491, %v489
    %v510 = vpack.c.bf16 %v492, %v490
    %v511 = vpack.c.bf16 %v495, %v493
    %v512 = vpack.c.bf16 %v496, %v494
    %v561 = vunpack.c.l.b16 %v55
    %v562 = vunpack.c.h.b16 %v55
    %v563 = vunpack.c.l.b16 %v56
    %v564 = vunpack.c.l.b16 %v57
    %v565 = vunpack.c.h.b16 %v57
    %v566 = vunpack.c.l.b16 %v58
    %v567 = vunpack.c.l.b16 %v59
    %v568 = vunpack.c.h.b16 %v59
    %v569 = vunpack.c.l.b16 %v60
    %v570 = vunpack.c.l.b16 %v61
    %v571 = vunpack.c.h.b16 %v61
    %v572 = vunpack.c.l.b16 %v62
    %v573 = vunpack.c.l.b16 %v63
    %v574 = vunpack.c.h.b16 %v63
    %v575 = vunpack.c.l.b16 %v64
    %v576 = vunpack.c.l.b16 %v65
    %v577 = vunpack.c.h.b16 %v65
    %v578 = vunpack.c.l.b16 %v66
    %v579 = vunpack.c.l.b16 %v67
    %v580 = vunpack.c.h.b16 %v67
    %v581 = vunpack.c.l.b16 %v68
    %v582 = vunpack.c.l.b16 %v69
    %v583 = vunpack.c.h.b16 %v69
    %v584 = vunpack.c.l.b16 %v70
    %v585 = vunpack.c.l.b16 %v71
    %v586 = vunpack.c.h.b16 %v71
    %v587 = vunpack.c.l.b16 %v72
    %v588 = vunpack.c.l.b16 %v73
    %v589 = vunpack.c.h.b16 %v73
    %v590 = vunpack.c.l.b16 %v74
    %v591 = vunpack.c.l.b16 %v75
    %v592 = vunpack.c.h.b16 %v75
    %v593 = vunpack.c.l.b16 %v76
    %v594 = vunpack.c.l.b16 %v77
    %v595 = vunpack.c.h.b16 %v77
    %v596 = vunpack.c.l.b16 %v78
    %v597 = vunpack.c.l.b16 %v79
    %v598 = vunpack.c.h.b16 %v79
    %v599 = vunpack.c.l.b16 %v80
    %v600 = vunpack.c.l.b16 %v81
    %v601 = vunpack.c.h.b16 %v81
    %v602 = vunpack.c.l.b16 %v82
    %v603 = vunpack.c.l.b16 %v83
    %v604 = vunpack.c.h.b16 %v83
    %v605 = vunpack.c.l.b16 %v84
    %v606 = vunpack.c.l.b16 %v85
    %v607 = vunpack.c.h.b16 %v85
    %v608 = vunpack.c.l.b16 %v86
    %v609 = vunpack.c.l.b16 %v87
    %v610 = vunpack.c.h.b16 %v87
    %v611 = vunpack.c.l.b16 %v88
    %v612 = vunpack.c.l.b16 %v89
    %v613 = vunpack.c.h.b16 %v89
    %v614 = vunpack.c.l.b16 %v90
    %v615 = vunpack.c.l.b16 %v91
    %v616 = vunpack.c.h.b16 %v91
    %v617 = vunpack.c.l.b16 %v92
    %v618 = vunpack.c.l.b16 %v93
    %v619 = vunpack.c.h.b16 %v93
    %v620 = vunpack.c.l.b16 %v94
    %v621 = vunpack.c.l.b16 %v95
    %v622 = vunpack.c.h.b16 %v95
    %v623 = vunpack.c.l.b16 %v96
    %v624 = vunpack.c.l.b16 %v97
    %v625 = vunpack.c.h.b16 %v97
    %v626 = vunpack.c.l.b16 %v98
    %v627 = vunpack.c.l.b16 %v99
    %v628 = vunpack.c.h.b16 %v99
    %v629 = vunpack.c.l.b16 %v100
    %v630 = vunpack.c.l.b16 %v101
    %v631 = vunpack.c.h.b16 %v101
    %v632 = vunpack.c.l.b16 %v102
    %v633 = vpack.c.b16 %v564, %v561
    %v634 = vpack.c.b16 %v565, %v562
    %v635 = vpack.c.b16 %v566, %v563
    %v636 = vpack.c.b16 %v570, %v567
    %v637 = vpack.c.b16 %v571, %v568
    %v638 = vpack.c.b16 %v572, %v569
    %v639 = vpack.c.b16 %v576, %v573
    %v640 = vpack.c.b16 %v577, %v574
    %v641 = vpack.c.b16 %v578, %v575
    %v642 = vpack.c.b16 %v582, %v579
    %v643 = vpack.c.b16 %v583, %v580
    %v644 = vpack.c.b16 %v584, %v581
    %v645 = vpack.c.b16 %v588, %v585
    %v646 = vpack.c.b16 %v589, %v586
    %v647 = vpack.c.b16 %v590, %v587
    %v648 = vpack.c.b16 %v594, %v591
    %v649 = vpack.c.b16 %v595, %v592
    %v650 = vpack.c.b16 %v596, %v593
    %v651 = vpack.c.b16 %v600, %v597
    %v652 = vpack.c.b16 %v601, %v598
    %v653 = vpack.c.b16 %v602, %v599
    %v654 = vpack.c.b16 %v606, %v603
    %v655 = vpack.c.b16 %v607, %v604
    %v656 = vpack.c.b16 %v608, %v605
    %v657 = vpack.c.b16 %v612, %v609
    %v658 = vpack.c.b16 %v613, %v610
    %v659 = vpack.c.b16 %v614, %v611
    %v660 = vpack.c.b16 %v618, %v615
    %v661 = vpack.c.b16 %v619, %v616
    %v662 = vpack.c.b16 %v620, %v617
    %v663 = vpack.c.b16 %v624, %v621
    %v664 = vpack.c.b16 %v625, %v622
    %v665 = vpack.c.b16 %v626, %v623
    %v666 = vpack.c.b16 %v630, %v627
    %v667 = vpack.c.b16 %v631, %v628
    %v668 = vpack.c.b16 %v632, %v629
    %705 = vmatprep.subr.bf16.mxu0 %v353
    %706 = vmatpush1.bf16.msra.mxu0 %v352
    %707 = vmatprep.subr.bf16.mxu0 %v355
    %708 = vmatpush1.bf16.msra.mxu0 %v354
    %709 = vmatprep.subr.bf16.mxu0 %v357
    %710 = vmatpush1.bf16.msra.mxu0 %v356
    %711 = vmatprep.subr.bf16.mxu0 %v359
    %712 = vmatpush1.bf16.msra.mxu0 %v358
    %713 = vmatprep.subr.bf16.mxu0 %v361
    %714 = vmatpush1.bf16.msra.mxu0 %v360
    %715 = vmatprep.subr.bf16.mxu0 %v363
    %716 = vmatpush1.bf16.msra.mxu0 %v362
    %717 = vmatprep.subr.bf16.mxu0 %v365
    %718 = vmatpush1.bf16.msra.mxu0 %v364
    %719 = vmatprep.subr.bf16.mxu0 %v367
    %720 = vmatpush1.bf16.msra.mxu0 %v366
    %721 = vmatprep.subr.bf16.mxu0 %v206
    %722 = vmatpush1.bf16.msra.mxu0 %v205
    %723 = vmatprep.subr.bf16.mxu0 %v208
    %724 = vmatpush1.bf16.msra.mxu0 %v207
    %725 = vmatprep.subr.bf16.mxu0 %v210
    %726 = vmatpush1.bf16.msra.mxu0 %v209
    %727 = vmatprep.subr.bf16.mxu0 %v212
    %728 = vmatpush1.bf16.msra.mxu0 %v211
    %729 = vmatprep.subr.bf16.mxu0 %v214
    %730 = vmatpush1.bf16.msra.mxu0 %v213
    %731 = vmatprep.subr.bf16.mxu0 %v216
    %732 = vmatpush1.bf16.msra.mxu0 %v215
    %733 = vmatprep.subr.bf16.mxu0 %v218
    %734 = vmatpush1.bf16.msra.mxu0 %v217
    %735 = vmatprep.subr.bf16.mxu0 %v220
    %736 = vmatpush1.bf16.msra.mxu0 %v219
    %737 = vmatprep.mubr.bf16.mxu0 %v634
    %738 = vmatmul.mubr.bf16.gmra.mrb[0].mxu0 %v633
    %v739 = vpop.f32.mrb[0].mxu0
    %v740 = vadd.f32 0.0, %v739
    %v741 = vpop.f32.mrb[0].mxu0
    %v742 = vadd.f32 0.0, %v741
    %v743 = vpop.f32.mrb[0].mxu0
    %v744 = vadd.f32 0.0, %v743
    %v745 = vpop.f32.mrb[0].mxu0
    %v746 = vadd.f32 0.0, %v745
    %747 = vmatprep.mubr.bf16.mxu0 %v637
    %748 = vmatmul.mubr.bf16.gmra.mrb[0].mxu0 %v636
    %v749 = vpop.f32.mrb[0].mxu0
    %v750 = vadd.f32 0.0, %v749
    %v751 = vpop.f32.mrb[0].mxu0
    %v752 = vadd.f32 0.0, %v751
    %v753 = vpop.f32.mrb[0].mxu0
    %v754 = vadd.f32 0.0, %v753
    %v755 = vpop.f32.mrb[0].mxu0
    %v756 = vadd.f32 0.0, %v755
    %757 = vmatprep.mubr.bf16.mxu0 %v640
    %758 = vmatmul.mubr.bf16.gmra.mrb[0].mxu0 %v639
    %v759 = vpop.f32.mrb[0].mxu0
    %v760 = vadd.f32 0.0, %v759
    %v761 = vpop.f32.mrb[0].mxu0
    %v762 = vadd.f32 0.0, %v761
    %v763 = vpop.f32.mrb[0].mxu0
    %v764 = vadd.f32 0.0, %v763
    %v765 = vpop.f32.mrb[0].mxu0
    %v766 = vadd.f32 0.0, %v765
    %767 = vmatprep.mubr.bf16.mxu0 %v643
    %768 = vmatmul.mubr.bf16.gmra.mrb[0].mxu0 %v642
    %v769 = vpop.f32.mrb[0].mxu0
    %v770 = vadd.f32 0.0, %v769
    %v771 = vpop.f32.mrb[0].mxu0
    %v772 = vadd.f32 0.0, %v771
    %v773 = vpop.f32.mrb[0].mxu0
    %v774 = vadd.f32 0.0, %v773
    %v775 = vpop.f32.mrb[0].mxu0
    %v776 = vadd.f32 0.0, %v775
    %777 = vmatprep.mubr.bf16.mxu0 %v646
    %778 = vmatmul.mubr.bf16.gmra.mrb[0].mxu0 %v645
    %v779 = vpop.f32.mrb[0].mxu0
    %v780 = vadd.f32 0.0, %v779
    %v781 = vpop.f32.mrb[0].mxu0
    %v782 = vadd.f32 0.0, %v781
    %v783 = vpop.f32.mrb[0].mxu0
    %v784 = vadd.f32 0.0, %v783
    %v785 = vpop.f32.mrb[0].mxu0
    %v786 = vadd.f32 0.0, %v785
    %787 = vmatprep.mubr.bf16.mxu0 %v649
    %788 = vmatmul.mubr.bf16.gmra.mrb[0].mxu0 %v648
    %v789 = vpop.f32.mrb[0].mxu0
    %v790 = vadd.f32 0.0, %v789
    %v791 = vpop.f32.mrb[0].mxu0
    %v792 = vadd.f32 0.0, %v791
    %v793 = vpop.f32.mrb[0].mxu0
    %v794 = vadd.f32 0.0, %v793
    %v795 = vpop.f32.mrb[0].mxu0
    %v796 = vadd.f32 0.0, %v795
    %797 = vmatprep.mubr.bf16.mxu0 %v652
    %798 = vmatmul.mubr.bf16.gmra.mrb[0].mxu0 %v651
    %v799 = vpop.f32.mrb[0].mxu0
    %v800 = vadd.f32 0.0, %v799
    %v801 = vpop.f32.mrb[0].mxu0
    %v802 = vadd.f32 0.0, %v801
    %v803 = vpop.f32.mrb[0].mxu0
    %v804 = vadd.f32 0.0, %v803
    %v805 = vpop.f32.mrb[0].mxu0
    %v806 = vadd.f32 0.0, %v805
    %807 = vmatprep.mubr.bf16.mxu0 %v655
    %808 = vmatmul.mubr.bf16.gmra.mrb[0].mxu0 %v654
    %v809 = vpop.f32.mrb[0].mxu0
    %v810 = vadd.f32 0.0, %v809
    %v811 = vpop.f32.mrb[0].mxu0
    %v812 = vadd.f32 0.0, %v811
    %v813 = vpop.f32.mrb[0].mxu0
    %v814 = vadd.f32 0.0, %v813
    %v815 = vpop.f32.mrb[0].mxu0
    %v816 = vadd.f32 0.0, %v815
    %817 = vmatprep.mubr.bf16.mxu0 %v658
    %818 = vmatmul.mubr.bf16.gmra.mrb[0].mxu0 %v657
    %v819 = vpop.f32.mrb[0].mxu0
    %v820 = vadd.f32 0.0, %v819
    %v821 = vpop.f32.mrb[0].mxu0
    %v822 = vadd.f32 0.0, %v821
    %v823 = vpop.f32.mrb[0].mxu0
    %v824 = vadd.f32 0.0, %v823
    %v825 = vpop.f32.mrb[0].mxu0
    %v826 = vadd.f32 0.0, %v825
    %827 = vmatprep.mubr.bf16.mxu0 %v661
    %828 = vmatmul.mubr.bf16.gmra.mrb[0].mxu0 %v660
    %v829 = vpop.f32.mrb[0].mxu0
    %v830 = vadd.f32 0.0, %v829
    %v831 = vpop.f32.mrb[0].mxu0
    %v832 = vadd.f32 0.0, %v831
    %v833 = vpop.f32.mrb[0].mxu0
    %v834 = vadd.f32 0.0, %v833
    %v835 = vpop.f32.mrb[0].mxu0
    %v836 = vadd.f32 0.0, %v835
    %837 = vmatprep.mubr.bf16.mxu0 %v664
    %838 = vmatmul.mubr.bf16.gmra.mrb[0].mxu0 %v663
    %v839 = vpop.f32.mrb[0].mxu0
    %v840 = vadd.f32 0.0, %v839
    %v841 = vpop.f32.mrb[0].mxu0
    %v842 = vadd.f32 0.0, %v841
    %v843 = vpop.f32.mrb[0].mxu0
    %v844 = vadd.f32 0.0, %v843
    %v845 = vpop.f32.mrb[0].mxu0
    %v846 = vadd.f32 0.0, %v845
    %847 = vmatprep.mubr.bf16.mxu0 %v667
    %848 = vmatmul.mubr.bf16.gmra.mrb[0].mxu0 %v666
    %v849 = vpop.f32.mrb[0].mxu0
    %v850 = vadd.f32 0.0, %v849
    %v851 = vpop.f32.mrb[0].mxu0
    %v852 = vadd.f32 0.0, %v851
    %v853 = vpop.f32.mrb[0].mxu0
    %v854 = vadd.f32 0.0, %v853
    %v855 = vpop.f32.mrb[0].mxu0
    %v856 = vadd.f32 0.0, %v855
    %857 = vdwg.mxu0
    %858 = vmatprep.subr.bf16.mxu0 %v498
    %859 = vmatpush1.bf16.msra.mxu0 %v497
    %860 = vmatprep.subr.bf16.mxu0 %v500
    %861 = vmatpush1.bf16.msra.mxu0 %v499
    %862 = vmatprep.subr.bf16.mxu0 %v502
    %863 = vmatpush1.bf16.msra.mxu0 %v501
    %864 = vmatprep.subr.bf16.mxu0 %v504
    %865 = vmatpush1.bf16.msra.mxu0 %v503
    %866 = vmatprep.subr.bf16.mxu0 %v506
    %867 = vmatpush1.bf16.msra.mxu0 %v505
    %868 = vmatprep.subr.bf16.mxu0 %v508
    %869 = vmatpush1.bf16.msra.mxu0 %v507
    %870 = vmatprep.subr.bf16.mxu0 %v510
    %871 = vmatpush1.bf16.msra.mxu0 %v509
    %872 = vmatprep.subr.bf16.mxu0 %v512
    %873 = vmatpush1.bf16.msra.mxu0 %v511
    %874 = vmatprep.subr.bf16.mxu0 0
    %875 = vmatpush1.bf16.msra.mxu0 0
    %876 = vmatprep.subr.bf16.mxu0 0
    %877 = vmatpush1.bf16.msra.mxu0 0
    %878 = vmatprep.subr.bf16.mxu0 0
    %879 = vmatpush1.bf16.msra.mxu0 0
    %880 = vmatprep.subr.bf16.mxu0 0
    %881 = vmatpush1.bf16.msra.mxu0 0
    %882 = vmatprep.subr.bf16.mxu0 0
    %883 = vmatpush1.bf16.msra.mxu0 0
    %884 = vmatprep.subr.bf16.mxu0 0
    %885 = vmatpush1.bf16.msra.mxu0 0
    %886 = vmatprep.subr.bf16.mxu0 0
    %887 = vmatpush1.bf16.msra.mxu0 0
    %888 = vmatprep.subr.bf16.mxu0 0
    %889 = vmatpush1.bf16.msra.mxu0 0
    %890 = vmatprep.mubr.bf16.mxu0 0
    %891 = vmatmul.mubr.bf16.gmra.mrb[0].mxu0 %v635
    %v892 = vpop.f32.mrb[0].mxu0
    %v893 = vadd.f32 %v740, %v892
    %v894 = vpop.f32.mrb[0].mxu0
    %v895 = vadd.f32 %v742, %v894
    %v896 = vpop.f32.mrb[0].mxu0
    %v897 = vadd.f32 %v744, %v896
    %v898 = vpop.f32.mrb[0].mxu0
    %v899 = vadd.f32 %v746, %v898
    %900 = vmatprep.mubr.bf16.mxu0 0
    %901 = vmatmul.mubr.bf16.gmra.mrb[0].mxu0 %v638
    %v902 = vpop.f32.mrb[0].mxu0
    %v903 = vadd.f32 %v750, %v902
    %v904 = vpop.f32.mrb[0].mxu0
    %v905 = vadd.f32 %v752, %v904
    %v906 = vpop.f32.mrb[0].mxu0
    %v907 = vadd.f32 %v754, %v906
    %v908 = vpop.f32.mrb[0].mxu0
    %v909 = vadd.f32 %v756, %v908
    %910 = vmatprep.mubr.bf16.mxu0 0
    %911 = vmatmul.mubr.bf16.gmra.mrb[0].mxu0 %v641
    %v912 = vpop.f32.mrb[0].mxu0
    %v913 = vadd.f32 %v760, %v912
    %v914 = vpop.f32.mrb[0].mxu0
    %v915 = vadd.f32 %v762, %v914
    %v916 = vpop.f32.mrb[0].mxu0
    %v917 = vadd.f32 %v764, %v916
    %v918 = vpop.f32.mrb[0].mxu0
    %v919 = vadd.f32 %v766, %v918
    %920 = vmatprep.mubr.bf16.mxu0 0
    %921 = vmatmul.mubr.bf16.gmra.mrb[0].mxu0 %v644
    %v922 = vpop.f32.mrb[0].mxu0
    %v923 = vadd.f32 %v770, %v922
    %v924 = vpop.f32.mrb[0].mxu0
    %v925 = vadd.f32 %v772, %v924
    %v926 = vpop.f32.mrb[0].mxu0
    %v927 = vadd.f32 %v774, %v926
    %v928 = vpop.f32.mrb[0].mxu0
    %v929 = vadd.f32 %v776, %v928
    %930 = vmatprep.mubr.bf16.mxu0 0
    %931 = vmatmul.mubr.bf16.gmra.mrb[0].mxu0 %v647
    %v932 = vpop.f32.mrb[0].mxu0
    %v933 = vadd.f32 %v780, %v932
    %v934 = vpop.f32.mrb[0].mxu0
    %v935 = vadd.f32 %v782, %v934
    %v936 = vpop.f32.mrb[0].mxu0
    %v937 = vadd.f32 %v784, %v936
    %v938 = vpop.f32.mrb[0].mxu0
    %v939 = vadd.f32 %v786, %v938
    %940 = vmatprep.mubr.bf16.mxu0 0
    %941 = vmatmul.mubr.bf16.gmra.mrb[0].mxu0 %v650
    %v942 = vpop.f32.mrb[0].mxu0
    %v943 = vadd.f32 %v790, %v942
    %v944 = vpop.f32.mrb[0].mxu0
    %v945 = vadd.f32 %v792, %v944
    %v946 = vpop.f32.mrb[0].mxu0
    %v947 = vadd.f32 %v794, %v946
    %v948 = vpop.f32.mrb[0].mxu0
    %v949 = vadd.f32 %v796, %v948
    %950 = vmatprep.mubr.bf16.mxu0 0
    %951 = vmatmul.mubr.bf16.gmra.mrb[0].mxu0 %v653
    %v952 = vpop.f32.mrb[0].mxu0
    %v953 = vadd.f32 %v800, %v952
    %v954 = vpop.f32.mrb[0].mxu0
    %v955 = vadd.f32 %v802, %v954
    %v956 = vpop.f32.mrb[0].mxu0
    %v957 = vadd.f32 %v804, %v956
    %v958 = vpop.f32.mrb[0].mxu0
    %v959 = vadd.f32 %v806, %v958
    %960 = vmatprep.mubr.bf16.mxu0 0
    %961 = vmatmul.mubr.bf16.gmra.mrb[0].mxu0 %v656
    %v962 = vpop.f32.mrb[0].mxu0
    %v963 = vadd.f32 %v810, %v962
    %v964 = vpop.f32.mrb[0].mxu0
    %v965 = vadd.f32 %v812, %v964
    %v966 = vpop.f32.mrb[0].mxu0
    %v967 = vadd.f32 %v814, %v966
    %v968 = vpop.f32.mrb[0].mxu0
    %v969 = vadd.f32 %v816, %v968
    %970 = vmatprep.mubr.bf16.mxu0 0
    %971 = vmatmul.mubr.bf16.gmra.mrb[0].mxu0 %v659
    %v972 = vpop.f32.mrb[0].mxu0
    %v973 = vadd.f32 %v820, %v972
    %v974 = vpop.f32.mrb[0].mxu0
    %v975 = vadd.f32 %v822, %v974
    %v976 = vpop.f32.mrb[0].mxu0
    %v977 = vadd.f32 %v824, %v976
    %v978 = vpop.f32.mrb[0].mxu0
    %v979 = vadd.f32 %v826, %v978
    %980 = vmatprep.mubr.bf16.mxu0 0
    %981 = vmatmul.mubr.bf16.gmra.mrb[0].mxu0 %v662
    %v982 = vpop.f32.mrb[0].mxu0
    %v983 = vadd.f32 %v830, %v982
    %v984 = vpop.f32.mrb[0].mxu0
    %v985 = vadd.f32 %v832, %v984
    %v986 = vpop.f32.mrb[0].mxu0
    %v987 = vadd.f32 %v834, %v986
    %v988 = vpop.f32.mrb[0].mxu0
    %v989 = vadd.f32 %v836, %v988
    %990 = vmatprep.mubr.bf16.mxu0 0
    %991 = vmatmul.mubr.bf16.gmra.mrb[0].mxu0 %v665
    %v992 = vpop.f32.mrb[0].mxu0
    %v993 = vadd.f32 %v840, %v992
    %v994 = vpop.f32.mrb[0].mxu0
    %v995 = vadd.f32 %v842, %v994
    %v996 = vpop.f32.mrb[0].mxu0
    %v997 = vadd.f32 %v844, %v996
    %v998 = vpop.f32.mrb[0].mxu0
    %v999 = vadd.f32 %v846, %v998
    %1000 = vmatprep.mubr.bf16.mxu0 0
    %1001 = vmatmul.mubr.bf16.gmra.mrb[0].mxu0 %v668
    %v1002 = vpop.f32.mrb[0].mxu0
    %v1003 = vadd.f32 %v850, %v1002
    %v1004 = vpop.f32.mrb[0].mxu0
    %v1005 = vadd.f32 %v852, %v1004
    %v1006 = vpop.f32.mrb[0].mxu0
    %v1007 = vadd.f32 %v854, %v1006
    %v1008 = vpop.f32.mrb[0].mxu0
    %v1009 = vadd.f32 %v856, %v1008
    %1010 = vdwg.mxu0
    %1011 = vrot.lane.b32.xlu0 %v893, 1
    %v1012 = vpop.permute.xlu0 %1011
    %1013 = vrot.lane.b32.xlu0 %v897, 1
    %v1014 = vpop.permute.xlu0 %1013
    %1015 = vrot.lane.b32.xlu0 %v903, 1
    %v1016 = vpop.permute.xlu0 %1015
    %1017 = vrot.lane.b32.xlu0 %v907, 1
    %v1018 = vpop.permute.xlu0 %1017
    %1019 = vrot.lane.b32.xlu0 %v913, 1
    %v1020 = vpop.permute.xlu0 %1019
    %1021 = vrot.lane.b32.xlu0 %v917, 1
    %v1022 = vpop.permute.xlu0 %1021
    %1023 = vrot.lane.b32.xlu0 %v923, 1
    %v1024 = vpop.permute.xlu0 %1023
    %1025 = vrot.lane.b32.xlu0 %v927, 1
    %v1026 = vpop.permute.xlu0 %1025
    %1027 = vrot.lane.b32.xlu0 %v895, 1
    %v1028 = vpop.permute.xlu0 %1027
    %1029 = vrot.lane.b32.xlu0 %v899, 1
    %v1030 = vpop.permute.xlu0 %1029
    %1031 = vrot.lane.b32.xlu0 %v905, 1
    %v1032 = vpop.permute.xlu0 %1031
    %1033 = vrot.lane.b32.xlu0 %v909, 1
    %v1034 = vpop.permute.xlu0 %1033
    %1035 = vrot.lane.b32.xlu0 %v915, 1
    %v1036 = vpop.permute.xlu0 %1035
    %1037 = vrot.lane.b32.xlu0 %v919, 1
    %v1038 = vpop.permute.xlu0 %1037
    %1039 = vrot.lane.b32.xlu0 %v925, 1
    %v1040 = vpop.permute.xlu0 %1039
    %1041 = vrot.lane.b32.xlu0 %v929, 1
    %v1042 = vpop.permute.xlu0 %1041
    %vm1043 = vcmp.lt.s32.totalorder %v286, 1
    %v1044 = vsel %vm1043, %v1012, %v1028
    %v1045 = vsel %vm1043, %v1014, %v1030
    %v1046 = vsel %vm1043, %v1016, %v1032
    %v1047 = vsel %vm1043, %v1018, %v1034
    %v1048 = vsel %vm1043, %v1020, %v1036
    %v1049 = vsel %vm1043, %v1022, %v1038
    %v1050 = vsel %vm1043, %v1024, %v1040
    %v1051 = vsel %vm1043, %v1026, %v1042
    %v1052 = vsel %vm1043, %v1028, %v1012
    %v1053 = vsel %vm1043, %v1030, %v1014
    %v1054 = vsel %vm1043, %v1032, %v1016
    %v1055 = vsel %vm1043, %v1034, %v1018
    %v1056 = vsel %vm1043, %v1036, %v1020
    %v1057 = vsel %vm1043, %v1038, %v1022
    %v1058 = vsel %vm1043, %v1040, %v1024
    %v1059 = vsel %vm1043, %v1042, %v1026
    %v1060 = vmul.f32 %v1052, %v155
    %v1061 = vmul.f32 %v1044, %v159
    %v1062 = vmul.f32 %v1053, %v155
    %v1063 = vmul.f32 %v1045, %v159
    %v1064 = vmul.f32 %v1054, %v155
    %v1065 = vmul.f32 %v1046, %v159
    %v1066 = vmul.f32 %v1055, %v155
    %v1067 = vmul.f32 %v1047, %v159
    %v1068 = vmul.f32 %v1056, %v155
    %v1069 = vmul.f32 %v1048, %v159
    %v1070 = vmul.f32 %v1057, %v155
    %v1071 = vmul.f32 %v1049, %v159
    %v1072 = vmul.f32 %v1058, %v155
    %v1073 = vmul.f32 %v1050, %v159
    %v1074 = vmul.f32 %v1059, %v155
    %v1075 = vmul.f32 %v1051, %v159
    %v1076 = vadd.f32 %v933, %v1060
    %v1077 = vadd.f32 %v935, %v1061
    %v1078 = vadd.f32 %v937, %v1062
    %v1079 = vadd.f32 %v939, %v1063
    %v1080 = vadd.f32 %v943, %v1064
    %v1081 = vadd.f32 %v945, %v1065
    %v1082 = vadd.f32 %v947, %v1066
    %v1083 = vadd.f32 %v949, %v1067
    %v1084 = vadd.f32 %v953, %v1068
    %v1085 = vadd.f32 %v955, %v1069
    %v1086 = vadd.f32 %v957, %v1070
    %v1087 = vadd.f32 %v959, %v1071
    %v1088 = vadd.f32 %v963, %v1072
    %v1089 = vadd.f32 %v965, %v1073
    %v1090 = vadd.f32 %v967, %v1074
    %v1091 = vadd.f32 %v969, %v1075
    %1092 = vrot.lane.b32.xlu0 %v973, 127
    %v1093 = vpop.permute.xlu0 %1092
    %1094 = vrot.lane.b32.xlu0 %v977, 127
    %v1095 = vpop.permute.xlu0 %1094
    %1096 = vrot.lane.b32.xlu0 %v983, 127
    %v1097 = vpop.permute.xlu0 %1096
    %1098 = vrot.lane.b32.xlu0 %v987, 127
    %v1099 = vpop.permute.xlu0 %1098
    %1100 = vrot.lane.b32.xlu0 %v993, 127
    %v1101 = vpop.permute.xlu0 %1100
    %1102 = vrot.lane.b32.xlu0 %v997, 127
    %v1103 = vpop.permute.xlu0 %1102
    %1104 = vrot.lane.b32.xlu0 %v1003, 127
    %v1105 = vpop.permute.xlu0 %1104
    %1106 = vrot.lane.b32.xlu0 %v1007, 127
    %v1107 = vpop.permute.xlu0 %1106
    %1108 = vrot.lane.b32.xlu0 %v975, 127
    %v1109 = vpop.permute.xlu0 %1108
    %1110 = vrot.lane.b32.xlu0 %v979, 127
    %v1111 = vpop.permute.xlu0 %1110
    %1112 = vrot.lane.b32.xlu0 %v985, 127
    %v1113 = vpop.permute.xlu0 %1112
    %1114 = vrot.lane.b32.xlu0 %v989, 127
    %v1115 = vpop.permute.xlu0 %1114
    %1116 = vrot.lane.b32.xlu0 %v995, 127
    %v1117 = vpop.permute.xlu0 %1116
    %1118 = vrot.lane.b32.xlu0 %v999, 127
    %v1119 = vpop.permute.xlu0 %1118
    %1120 = vrot.lane.b32.xlu0 %v1005, 127
    %v1121 = vpop.permute.xlu0 %1120
    %1122 = vrot.lane.b32.xlu0 %v1009, 127
    %v1123 = vpop.permute.xlu0 %1122
    %vm1124 = vcmp.lt.s32.totalorder %v286, 127
    %v1125 = vsel %vm1124, %v1093, %v1109
    %v1126 = vsel %vm1124, %v1095, %v1111
    %v1127 = vsel %vm1124, %v1097, %v1113
    %v1128 = vsel %vm1124, %v1099, %v1115
    %v1129 = vsel %vm1124, %v1101, %v1117
    %v1130 = vsel %vm1124, %v1103, %v1119
    %v1131 = vsel %vm1124, %v1105, %v1121
    %v1132 = vsel %vm1124, %v1107, %v1123
    %v1133 = vsel %vm1124, %v1109, %v1093
    %v1134 = vsel %vm1124, %v1111, %v1095
    %v1135 = vsel %vm1124, %v1113, %v1097
    %v1136 = vsel %vm1124, %v1115, %v1099
    %v1137 = vsel %vm1124, %v1117, %v1101
    %v1138 = vsel %vm1124, %v1119, %v1103
    %v1139 = vsel %vm1124, %v1121, %v1105
    %v1140 = vsel %vm1124, %v1123, %v1107
    %v1141 = vmul.f32 %v1125, %v166
    %v1142 = vmul.f32 %v1133, %v170
    %v1143 = vmul.f32 %v1126, %v166
    %v1144 = vmul.f32 %v1134, %v170
    %v1145 = vmul.f32 %v1127, %v166
    %v1146 = vmul.f32 %v1135, %v170
    %v1147 = vmul.f32 %v1128, %v166
    %v1148 = vmul.f32 %v1136, %v170
    %v1149 = vmul.f32 %v1129, %v166
    %v1150 = vmul.f32 %v1137, %v170
    %v1151 = vmul.f32 %v1130, %v166
    %v1152 = vmul.f32 %v1138, %v170
    %v1153 = vmul.f32 %v1131, %v166
    %v1154 = vmul.f32 %v1139, %v170
    %v1155 = vmul.f32 %v1132, %v166
    %v1156 = vmul.f32 %v1140, %v170
    %v1157 = vadd.f32 %v1076, %v1141
    %v1158 = vadd.f32 %v1077, %v1142
    %v1159 = vadd.f32 %v1078, %v1143
    %v1160 = vadd.f32 %v1079, %v1144
    %v1161 = vadd.f32 %v1080, %v1145
    %v1162 = vadd.f32 %v1081, %v1146
    %v1163 = vadd.f32 %v1082, %v1147
    %v1164 = vadd.f32 %v1083, %v1148
    %v1165 = vadd.f32 %v1084, %v1149
    %v1166 = vadd.f32 %v1085, %v1150
    %v1167 = vadd.f32 %v1086, %v1151
    %v1168 = vadd.f32 %v1087, %v1152
    %v1169 = vadd.f32 %v1088, %v1153
    %v1170 = vadd.f32 %v1089, %v1154
    %v1171 = vadd.f32 %v1090, %v1155
    %v1172 = vadd.f32 %v1091, %v1156
    %1174 = vset.pattern.permute.xlu0 0
    %1175 = vperm.xlu0 %1174, %v105
    %v1176 = vpop.permute.xlu0 %1175
    %1179 = vset.pattern.permute.xlu0 0
    %1180 = vperm.xlu0 %1179, %v106
    %v1181 = vpop.permute.xlu0 %1180
    %1184 = vset.pattern.permute.xlu0 0
    %1185 = vperm.xlu0 %1184, %v107
    %v1186 = vpop.permute.xlu0 %1185
    %1189 = vset.pattern.permute.xlu0 0
    %1190 = vperm.xlu0 %1189, %v108
    %v1191 = vpop.permute.xlu0 %1190
    %1194 = vset.pattern.permute.xlu0 0
    %1195 = vperm.xlu0 %1194, %v109
    %v1196 = vpop.permute.xlu0 %1195
    %1199 = vset.pattern.permute.xlu0 0
    %1200 = vperm.xlu0 %1199, %v110
    %v1201 = vpop.permute.xlu0 %1200
    %1204 = vset.pattern.permute.xlu0 0
    %1205 = vperm.xlu0 %1204, %v111
    %v1206 = vpop.permute.xlu0 %1205
    %1209 = vset.pattern.permute.xlu0 0
    %1210 = vperm.xlu0 %1209, %v112
    %v1211 = vpop.permute.xlu0 %1210
    %v1213 = vadd.f32 %v1157, %v1176
    %v1214 = vadd.f32 %v1158, %v1176
    %v1215 = vadd.f32 %v1159, %v1181
    %v1216 = vadd.f32 %v1160, %v1181
    %v1217 = vadd.f32 %v1161, %v1186
    %v1218 = vadd.f32 %v1162, %v1186
    %v1219 = vadd.f32 %v1163, %v1191
    %v1220 = vadd.f32 %v1164, %v1191
    %v1221 = vadd.f32 %v1165, %v1196
    %v1222 = vadd.f32 %v1166, %v1196
    %v1223 = vadd.f32 %v1167, %v1201
    %v1224 = vadd.f32 %v1168, %v1201
    %v1225 = vadd.f32 %v1169, %v1206
    %v1226 = vadd.f32 %v1170, %v1206
    %v1227 = vadd.f32 %v1171, %v1211
    %v1228 = vadd.f32 %v1172, %v1211
    %v1229 = vmax.f32 %v1213, 0.0
    %v1230 = vmax.f32 %v1214, 0.0
    %v1231 = vmax.f32 %v1215, 0.0
    %v1232 = vmax.f32 %v1216, 0.0
    %v1233 = vmax.f32 %v1217, 0.0
    %v1234 = vmax.f32 %v1218, 0.0
    %v1235 = vmax.f32 %v1219, 0.0
    %v1236 = vmax.f32 %v1220, 0.0
    %v1237 = vmax.f32 %v1221, 0.0
    %v1238 = vmax.f32 %v1222, 0.0
    %v1239 = vmax.f32 %v1223, 0.0
    %v1240 = vmax.f32 %v1224, 0.0
    %v1241 = vmax.f32 %v1225, 0.0
    %v1242 = vmax.f32 %v1226, 0.0
    %v1243 = vmax.f32 %v1227, 0.0
    %v1244 = vmax.f32 %v1228, 0.0
    %v1245 = vpack.c.bf16 %v1231, %v1229
    %v1246 = vpack.c.bf16 %v1232, %v1230
    %v1247 = vpack.c.bf16 %v1235, %v1233
    %v1248 = vpack.c.bf16 %v1236, %v1234
    %v1249 = vpack.c.bf16 %v1239, %v1237
    %v1250 = vpack.c.bf16 %v1240, %v1238
    %v1251 = vpack.c.bf16 %v1243, %v1241
    %v1252 = vpack.c.bf16 %v1244, %v1242
    %v1255 = vunpack.c.l.b16 %v103
    %v1256 = vunpack.c.l.b16 %v104
    %v1257 = vpack.c.b16 %v1256, %v1255
    %vm1258 = vcmask 523264
    %v1260 = vsel %vm1258, %v1257, 0
    %1262 = vmatprep.subr.bf16.mxu0 %v1246
    %1263 = vmatpush1.bf16.msra.mxu0 %v1245
    %1264 = vmatprep.subr.bf16.mxu0 %v1248
    %1265 = vmatpush1.bf16.msra.mxu0 %v1247
    %1266 = vmatprep.subr.bf16.mxu0 %v1250
    %1267 = vmatpush1.bf16.msra.mxu0 %v1249
    %1268 = vmatprep.subr.bf16.mxu0 %v1252
    %1269 = vmatpush1.bf16.msra.mxu0 %v1251
    %1270 = vmatprep.subr.bf16.mxu0 0
    %1271 = vmatpush1.bf16.msra.mxu0 0
    %1272 = vmatprep.subr.bf16.mxu0 0
    %1273 = vmatpush1.bf16.msra.mxu0 0
    %1274 = vmatprep.subr.bf16.mxu0 0
    %1275 = vmatpush1.bf16.msra.mxu0 0
    %1276 = vmatprep.subr.bf16.mxu0 0
    %1277 = vmatpush1.bf16.msra.mxu0 0
    %1278 = vmatprep.subr.bf16.mxu0 0
    %1279 = vmatpush1.bf16.msra.mxu0 0
    %1280 = vmatprep.subr.bf16.mxu0 0
    %1281 = vmatpush1.bf16.msra.mxu0 0
    %1282 = vmatprep.subr.bf16.mxu0 0
    %1283 = vmatpush1.bf16.msra.mxu0 0
    %1284 = vmatprep.subr.bf16.mxu0 0
    %1285 = vmatpush1.bf16.msra.mxu0 0
    %1286 = vmatprep.subr.bf16.mxu0 0
    %1287 = vmatpush1.bf16.msra.mxu0 0
    %1288 = vmatprep.subr.bf16.mxu0 0
    %1289 = vmatpush1.bf16.msra.mxu0 0
    %1290 = vmatprep.subr.bf16.mxu0 0
    %1291 = vmatpush1.bf16.msra.mxu0 0
    %1292 = vmatprep.subr.bf16.mxu0 0
    %1293 = vmatpush1.bf16.msra.mxu0 0
    %1294 = vmatprep.mubr.bf16.mxu0 0
    %1295 = vmatmul.mubr.bf16.gmra.mrb[0].mxu0 %v1260
    %v1296 = vpop.f32.mrb[0].mxu0
    %v1297 = vadd.f32 0.0, %v1296
    %v1298 = vpop.f32.mrb[0].mxu0
    %v1299 = vadd.f32 0.0, %v1298
    %v1300 = vpop.f32.mrb[0].mxu0
    %v1301 = vadd.f32 0.0, %v1300
    %v1302 = vpop.f32.mrb[0].mxu0
    %v1303 = vadd.f32 0.0, %v1302
    %1304 = vdwg.mxu0
    %1305 = vrot.lane.b32.xlu0 %v1297, 17
    %v1306 = vpop.permute.xlu0 %1305
    %1307 = vrot.lane.b32.xlu0 %v1299, 17
    %v1308 = vpop.permute.xlu0 %1307
    %vm1309 = vcmp.lt.s32.totalorder %v286, 17
    %v1310 = vsel %vm1309, %v1306, %v1308
    %v1311 = vsel %vm1309, %v1308, %v1306
    %v1313 = vlaneseq
    %v1314 = vshrl.u32 %v1313, 7
    %v1315 = vsub.s32 0, %v1314
    %v1316 = vrot.slane %v114, %v1315
    %v1317 = vlaneseq
    %v1318 = vshrl.u32 %v1317, 7
    %v1319 = vsub.s32 1, %v1318
    %v1320 = vrot.slane %v114, %v1319
    %v1323 = vmul.f32 %v1311, %v1316
    %v1324 = vmul.f32 %v1310, %v1320
    %v1327 = vrot.slane %v1323, 4
    %v1328 = vrot.slane %v1324, 4
    %v1331 = vadd.f32 %v1297, %v1327
    %v1332 = vadd.f32 %v1299, %v1328
    %v1335 = vrot.slane %v1297, 1
    %v1336 = vrot.slane %v1299, 1
    %1339 = vrot.lane.b32.xlu0 %v1335, 16
    %v1340 = vpop.permute.xlu0 %1339
    %1341 = vrot.lane.b32.xlu0 %v1336, 16
    %v1342 = vpop.permute.xlu0 %1341
    %v1343 = vsel %vm287, %v1340, %v1342
    %v1344 = vsel %vm287, %v1342, %v1340
    %v1345 = vmul.f32 %v1344, %v133
    %v1346 = vmul.f32 %v1343, %v137
    %v1349 = vrot.slane %v1345, 4
    %v1350 = vrot.slane %v1346, 4
    %v1353 = vadd.f32 %v1331, %v1349
    %v1354 = vadd.f32 %v1332, %v1350
    %v1355 = vrot.slane %v1297, 2
    %v1356 = vrot.slane %v1299, 2
    %1359 = vrot.lane.b32.xlu0 %v1355, 15
    %v1360 = vpop.permute.xlu0 %1359
    %1361 = vrot.lane.b32.xlu0 %v1356, 15
    %v1362 = vpop.permute.xlu0 %1361
    %vm1363 = vcmp.lt.s32.totalorder %v286, 15
    %v1364 = vsel %vm1363, %v1360, %v1362
    %v1365 = vsel %vm1363, %v1362, %v1360
    %v1367 = vlaneseq
    %v1368 = vshrl.u32 %v1367, 7
    %v1369 = vsub.s32 0, %v1368
    %v1370 = vrot.slane %v118, %v1369
    %v1371 = vlaneseq
    %v1372 = vshrl.u32 %v1371, 7
    %v1373 = vsub.s32 1, %v1372
    %v1374 = vrot.slane %v118, %v1373
    %v1377 = vmul.f32 %v1365, %v1370
    %v1378 = vmul.f32 %v1364, %v1374
    %v1381 = vrot.slane %v1377, 4
    %v1382 = vrot.slane %v1378, 4
    %v1385 = vadd.f32 %v1353, %v1381
    %v1386 = vadd.f32 %v1354, %v1382
    %v1387 = vrot.slane %v1297, 3
    %v1388 = vrot.slane %v1299, 3
    %1391 = vrot.lane.b32.xlu0 %v1387, 1
    %v1392 = vpop.permute.xlu0 %1391
    %1393 = vrot.lane.b32.xlu0 %v1388, 1
    %v1394 = vpop.permute.xlu0 %1393
    %v1395 = vsel %vm1043, %v1392, %v1394
    %v1396 = vsel %vm1043, %v1394, %v1392
    %v1397 = vmul.f32 %v1396, %v155
    %v1398 = vmul.f32 %v1395, %v159
    %v1401 = vrot.slane %v1397, 4
    %v1402 = vrot.slane %v1398, 4
    %v1405 = vadd.f32 %v1385, %v1401
    %v1406 = vadd.f32 %v1386, %v1402
    %v1407 = vrot.slane %v1297, 5
    %v1408 = vrot.slane %v1299, 5
    %1411 = vrot.lane.b32.xlu0 %v1407, 127
    %v1412 = vpop.permute.xlu0 %1411
    %1413 = vrot.lane.b32.xlu0 %v1408, 127
    %v1414 = vpop.permute.xlu0 %1413
    %v1415 = vsel %vm1124, %v1412, %v1414
    %v1416 = vsel %vm1124, %v1414, %v1412
    %v1417 = vmul.f32 %v1415, %v166
    %v1418 = vmul.f32 %v1416, %v170
    %v1421 = vrot.slane %v1417, 4
    %v1422 = vrot.slane %v1418, 4
    %v1425 = vadd.f32 %v1405, %v1421
    %v1426 = vadd.f32 %v1406, %v1422
    %v1427 = vrot.slane %v1297, 6
    %v1428 = vrot.slane %v1299, 6
    %1431 = vrot.lane.b32.xlu0 %v1427, 113
    %v1432 = vpop.permute.xlu0 %1431
    %1433 = vrot.lane.b32.xlu0 %v1428, 113
    %v1434 = vpop.permute.xlu0 %1433
    %vm1435 = vcmp.lt.s32.totalorder %v286, 113
    %v1436 = vsel %vm1435, %v1432, %v1434
    %v1437 = vsel %vm1435, %v1434, %v1432
    %v1439 = vlaneseq
    %v1440 = vshrl.u32 %v1439, 7
    %v1441 = vsub.s32 0, %v1440
    %v1442 = vrot.slane %v124, %v1441
    %v1443 = vlaneseq
    %v1444 = vshrl.u32 %v1443, 7
    %v1445 = vsub.s32 1, %v1444
    %v1446 = vrot.slane %v124, %v1445
    %v1449 = vmul.f32 %v1436, %v1442
    %v1450 = vmul.f32 %v1437, %v1446
    %v1453 = vrot.slane %v1449, 4
    %v1454 = vrot.slane %v1450, 4
    %v1457 = vadd.f32 %v1425, %v1453
    %v1458 = vadd.f32 %v1426, %v1454
    %v1459 = vrot.slane %v1297, 7
    %v1460 = vrot.slane %v1299, 7
    %1463 = vrot.lane.b32.xlu0 %v1459, 112
    %v1464 = vpop.permute.xlu0 %1463
    %1465 = vrot.lane.b32.xlu0 %v1460, 112
    %v1466 = vpop.permute.xlu0 %1465
    %v1467 = vsel %vm432, %v1464, %v1466
    %v1468 = vsel %vm432, %v1466, %v1464
    %v1469 = vmul.f32 %v1467, %v144
    %v1470 = vmul.f32 %v1468, %v148
    %v1473 = vrot.slane %v1469, 4
    %v1474 = vrot.slane %v1470, 4
    %v1477 = vadd.f32 %v1457, %v1473
    %v1478 = vadd.f32 %v1458, %v1474
    %1479 = vrot.lane.b32.xlu0 %v1301, 111
    %v1480 = vpop.permute.xlu0 %1479
    %1481 = vrot.lane.b32.xlu0 %v1303, 111
    %v1482 = vpop.permute.xlu0 %1481
    %vm1483 = vcmp.lt.s32.totalorder %v286, 111
    %v1484 = vsel %vm1483, %v1480, %v1482
    %v1485 = vsel %vm1483, %v1482, %v1480
    %v1487 = vlaneseq
    %v1488 = vshrl.u32 %v1487, 7
    %v1489 = vsub.s32 0, %v1488
    %v1490 = vrot.slane %v128, %v1489
    %v1491 = vlaneseq
    %v1492 = vshrl.u32 %v1491, 7
    %v1493 = vsub.s32 1, %v1492
    %v1494 = vrot.slane %v128, %v1493
    %v1497 = vmul.f32 %v1484, %v1490
    %v1498 = vmul.f32 %v1485, %v1494
    %v1501 = vrot.slane %v1497, 4
    %v1502 = vrot.slane %v1498, 4
    %v1505 = vadd.f32 %v1477, %v1501
    %v1506 = vadd.f32 %v1478, %v1502
    %1508 = vset.pattern.permute.xlu0 0
    %1509 = vperm.xlu0 %1508, %v113
    %v1510 = vpop.permute.xlu0 %1509
    %v1512 = vlaneseq
    %v1513 = vshrl.u32 %v1512, 7
    %v1514 = vsub.s32 0, %v1513
    %v1515 = vrot.slane %v1510, %v1514
    %v1516 = vadd.f32 %v1505, %v1515
    %v1517 = vadd.f32 %v1506, %v1515
    %v1518 = vxor.u32 %v1516, 2147483648
    %v1519 = vxor.u32 %v1517, 2147483648
    %v1520 = vmul.f32 %v1518, 1.442695
    %v1521 = vpow.pop %v1520
    %v1522 = vmul.f32 %v1519, 1.442695
    %v1523 = vpow.pop %v1522
    %v1524 = vadd.f32 %v1521, 1.0
    %v1525 = vadd.f32 %v1523, 1.0
    %v1526 = vrcp.pop %v1524
    %v1527 = vmul.f32 1.0, %v1526
    %v1528 = vrcp.pop %v1525
    %v1529 = vmul.f32 1.0, %v1528
    %v1532 = vcombine.high %v1527, %v1529
    %v1534 = vunpack.c.l.s4 1966171168
    %v1535 = vunpack.c.0.s8 %v1534
    %v1536 = vlaneseq
    %v1537 = vshrl.u32 %v1536, 7
    %v1538 = vsub.s32 %v1535, %v1537
    %v1539 = vrot.slane %v1532, %v1538
    %v1541 = vunpack.c.l.s4 1966171168
    %v1542 = vunpack.c.0.s8 %v1541
    %v1543 = vlaneseq
    %v1544 = vshrl.u32 %v1543, 7
    %v1545 = vsub.s32 %v1542, %v1544
    %v1546 = vrot.slane %v1539, %v1545
    %v1548 = vlaneseq
    %vm1549 = vcmp.ge.s32.totalorder %v1548, 0
    %vm1550 = vcmp.lt.s32.totalorder %v1548, 256
    %vm1551 = vmand %vm1549, %vm1550
    %1552 = vst.msk [vmem:[#allocation8] sm:$0x3] %vm1551, %v1546
    %s1553 = scalar_lea.vmem [#allocation3], 256
    %v1554 = vld [vmem:[%s1553] sm:$0xff]
    %v1555 = vld [vmem:[%s1553 + $0x8] sm:$0xff]
    %v1556 = vld [vmem:[%s1553 + $0x10] sm:$0xff]
    %v1557 = vld [vmem:[%s1553 + $0x18] sm:$0xff]
    %v1558 = vld [vmem:[%s1553 + $0x20] sm:$0xff]
    %v1559 = vld [vmem:[%s1553 + $0x28] sm:$0xff]
    %v1560 = vld [vmem:[%s1553 + $0x30] sm:$0xff]
    %v1561 = vld [vmem:[%s1553 + $0x38] sm:$0xff]
    %v1562 = vld [vmem:[%s1553 + $0x40] sm:$0xff]
    %v1563 = vld [vmem:[%s1553 + $0x48] sm:$0xff]
    %v1564 = vld [vmem:[%s1553 + $0x50] sm:$0xff]
    %v1565 = vld [vmem:[%s1553 + $0x58] sm:$0xff]
    %v1566 = vld [vmem:[%s1553 + $0x60] sm:$0xff]
    %v1567 = vld [vmem:[%s1553 + $0x68] sm:$0xff]
    %v1568 = vld [vmem:[%s1553 + $0x70] sm:$0xff]
    %v1569 = vld [vmem:[%s1553 + $0x78] sm:$0xff]
    %v1570 = vld [vmem:[%s1553 + $0x80] sm:$0xff]
    %v1571 = vld [vmem:[%s1553 + $0x88] sm:$0xff]
    %v1572 = vld [vmem:[%s1553 + $0x90] sm:$0xff]
    %v1573 = vld [vmem:[%s1553 + $0x98] sm:$0xff]
    %v1574 = vld [vmem:[%s1553 + $0xa0] sm:$0xff]
    %v1575 = vld [vmem:[%s1553 + $0xa8] sm:$0xff]
    %v1576 = vld [vmem:[%s1553 + $0xb0] sm:$0xff]
    %v1577 = vld [vmem:[%s1553 + $0xb8] sm:$0xff]
    %v1578 = vld [vmem:[%s1553 + $0xc0] sm:$0xff]
    %v1579 = vld [vmem:[%s1553 + $0xc8] sm:$0xff]
    %v1580 = vld [vmem:[%s1553 + $0xd0] sm:$0xff]
    %v1581 = vld [vmem:[%s1553 + $0xd8] sm:$0xff]
    %v1582 = vld [vmem:[%s1553 + $0xe0] sm:$0xff]
    %v1583 = vld [vmem:[%s1553 + $0xe8] sm:$0xff]
    %v1584 = vld [vmem:[%s1553 + $0xf0] sm:$0xff]
    %v1585 = vld [vmem:[%s1553 + $0xf8] sm:$0xff]
    %v1586 = vpack.c.bf16 %v1556, %v1554
    %v1587 = vpack.c.bf16 %v1557, %v1555
    %v1588 = vpack.c.bf16 %v1560, %v1558
    %v1589 = vpack.c.bf16 %v1561, %v1559
    %v1590 = vpack.c.bf16 %v1564, %v1562
    %v1591 = vpack.c.bf16 %v1565, %v1563
    %v1592 = vpack.c.bf16 %v1568, %v1566
    %v1593 = vpack.c.bf16 %v1569, %v1567
    %v1594 = vpack.c.bf16 %v1572, %v1570
    %v1595 = vpack.c.bf16 %v1573, %v1571
    %v1596 = vpack.c.bf16 %v1576, %v1574
    %v1597 = vpack.c.bf16 %v1577, %v1575
    %v1598 = vpack.c.bf16 %v1580, %v1578
    %v1599 = vpack.c.bf16 %v1581, %v1579
    %v1600 = vpack.c.bf16 %v1584, %v1582
    %v1601 = vpack.c.bf16 %v1585, %v1583
    %1602 = vrot.lane.b32.xlu0 %v1554, 16
    %v1603 = vpop.permute.xlu0 %1602
    %1604 = vrot.lane.b32.xlu0 %v1556, 16
    %v1605 = vpop.permute.xlu0 %1604
    %1606 = vrot.lane.b32.xlu0 %v1558, 16
    %v1607 = vpop.permute.xlu0 %1606
    %1608 = vrot.lane.b32.xlu0 %v1560, 16
    %v1609 = vpop.permute.xlu0 %1608
    %1610 = vrot.lane.b32.xlu0 %v1562, 16
    %v1611 = vpop.permute.xlu0 %1610
    %1612 = vrot.lane.b32.xlu0 %v1564, 16
    %v1613 = vpop.permute.xlu0 %1612
    %1614 = vrot.lane.b32.xlu0 %v1566, 16
    %v1615 = vpop.permute.xlu0 %1614
    %1616 = vrot.lane.b32.xlu0 %v1568, 16
    %v1617 = vpop.permute.xlu0 %1616
    %1618 = vrot.lane.b32.xlu0 %v1570, 16
    %v1619 = vpop.permute.xlu0 %1618
    %1620 = vrot.lane.b32.xlu0 %v1572, 16
    %v1621 = vpop.permute.xlu0 %1620
    %1622 = vrot.lane.b32.xlu0 %v1574, 16
    %v1623 = vpop.permute.xlu0 %1622
    %1624 = vrot.lane.b32.xlu0 %v1576, 16
    %v1625 = vpop.permute.xlu0 %1624
    %1626 = vrot.lane.b32.xlu0 %v1578, 16
    %v1627 = vpop.permute.xlu0 %1626
    %1628 = vrot.lane.b32.xlu0 %v1580, 16
    %v1629 = vpop.permute.xlu0 %1628
    %1630 = vrot.lane.b32.xlu0 %v1582, 16
    %v1631 = vpop.permute.xlu0 %1630
    %1632 = vrot.lane.b32.xlu0 %v1584, 16
    %v1633 = vpop.permute.xlu0 %1632
    %1634 = vrot.lane.b32.xlu0 %v1555, 16
    %v1635 = vpop.permute.xlu0 %1634
    %1636 = vrot.lane.b32.xlu0 %v1557, 16
    %v1637 = vpop.permute.xlu0 %1636
    %1638 = vrot.lane.b32.xlu0 %v1559, 16
    %v1639 = vpop.permute.xlu0 %1638
    %1640 = vrot.lane.b32.xlu0 %v1561, 16
    %v1641 = vpop.permute.xlu0 %1640
    %1642 = vrot.lane.b32.xlu0 %v1563, 16
    %v1643 = vpop.permute.xlu0 %1642
    %1644 = vrot.lane.b32.xlu0 %v1565, 16
    %v1645 = vpop.permute.xlu0 %1644
    %1646 = vrot.lane.b32.xlu0 %v1567, 16
    %v1647 = vpop.permute.xlu0 %1646
    %1648 = vrot.lane.b32.xlu0 %v1569, 16
    %v1649 = vpop.permute.xlu0 %1648
    %1650 = vrot.lane.b32.xlu0 %v1571, 16
    %v1651 = vpop.permute.xlu0 %1650
    %1652 = vrot.lane.b32.xlu0 %v1573, 16
    %v1653 = vpop.permute.xlu0 %1652
    %1654 = vrot.lane.b32.xlu0 %v1575, 16
    %v1655 = vpop.permute.xlu0 %1654
    %1656 = vrot.lane.b32.xlu0 %v1577, 16
    %v1657 = vpop.permute.xlu0 %1656
    %1658 = vrot.lane.b32.xlu0 %v1579, 16
    %v1659 = vpop.permute.xlu0 %1658
    %1660 = vrot.lane.b32.xlu0 %v1581, 16
    %v1661 = vpop.permute.xlu0 %1660
    %1662 = vrot.lane.b32.xlu0 %v1583, 16
    %v1663 = vpop.permute.xlu0 %1662
    %1664 = vrot.lane.b32.xlu0 %v1585, 16
    %v1665 = vpop.permute.xlu0 %1664
    %v1666 = vsel %vm287, %v1603, %v1635
    %v1667 = vsel %vm287, %v1605, %v1637
    %v1668 = vsel %vm287, %v1607, %v1639
    %v1669 = vsel %vm287, %v1609, %v1641
    %v1670 = vsel %vm287, %v1611, %v1643
    %v1671 = vsel %vm287, %v1613, %v1645
    %v1672 = vsel %vm287, %v1615, %v1647
    %v1673 = vsel %vm287, %v1617, %v1649
    %v1674 = vsel %vm287, %v1619, %v1651
    %v1675 = vsel %vm287, %v1621, %v1653
    %v1676 = vsel %vm287, %v1623, %v1655
    %v1677 = vsel %vm287, %v1625, %v1657
    %v1678 = vsel %vm287, %v1627, %v1659
    %v1679 = vsel %vm287, %v1629, %v1661
    %v1680 = vsel %vm287, %v1631, %v1663
    %v1681 = vsel %vm287, %v1633, %v1665
    %v1682 = vsel %vm287, %v1635, %v1603
    %v1683 = vsel %vm287, %v1637, %v1605
    %v1684 = vsel %vm287, %v1639, %v1607
    %v1685 = vsel %vm287, %v1641, %v1609
    %v1686 = vsel %vm287, %v1643, %v1611
    %v1687 = vsel %vm287, %v1645, %v1613
    %v1688 = vsel %vm287, %v1647, %v1615
    %v1689 = vsel %vm287, %v1649, %v1617
    %v1690 = vsel %vm287, %v1651, %v1619
    %v1691 = vsel %vm287, %v1653, %v1621
    %v1692 = vsel %vm287, %v1655, %v1623
    %v1693 = vsel %vm287, %v1657, %v1625
    %v1694 = vsel %vm287, %v1659, %v1627
    %v1695 = vsel %vm287, %v1661, %v1629
    %v1696 = vsel %vm287, %v1663, %v1631
    %v1697 = vsel %vm287, %v1665, %v1633
    %v1698 = vmul.f32 %v1682, %v133
    %v1699 = vmul.f32 %v1666, %v137
    %v1700 = vmul.f32 %v1683, %v133
    %v1701 = vmul.f32 %v1667, %v137
    %v1702 = vmul.f32 %v1684, %v133
    %v1703 = vmul.f32 %v1668, %v137
    %v1704 = vmul.f32 %v1685, %v133
    %v1705 = vmul.f32 %v1669, %v137
    %v1706 = vmul.f32 %v1686, %v133
    %v1707 = vmul.f32 %v1670, %v137
    %v1708 = vmul.f32 %v1687, %v133
    %v1709 = vmul.f32 %v1671, %v137
    %v1710 = vmul.f32 %v1688, %v133
    %v1711 = vmul.f32 %v1672, %v137
    %v1712 = vmul.f32 %v1689, %v133
    %v1713 = vmul.f32 %v1673, %v137
    %v1714 = vmul.f32 %v1690, %v133
    %v1715 = vmul.f32 %v1674, %v137
    %v1716 = vmul.f32 %v1691, %v133
    %v1717 = vmul.f32 %v1675, %v137
    %v1718 = vmul.f32 %v1692, %v133
    %v1719 = vmul.f32 %v1676, %v137
    %v1720 = vmul.f32 %v1693, %v133
    %v1721 = vmul.f32 %v1677, %v137
    %v1722 = vmul.f32 %v1694, %v133
    %v1723 = vmul.f32 %v1678, %v137
    %v1724 = vmul.f32 %v1695, %v133
    %v1725 = vmul.f32 %v1679, %v137
    %v1726 = vmul.f32 %v1696, %v133
    %v1727 = vmul.f32 %v1680, %v137
    %v1728 = vmul.f32 %v1697, %v133
    %v1729 = vmul.f32 %v1681, %v137
    %v1730 = vpack.c.bf16 %v1700, %v1698
    %v1731 = vpack.c.bf16 %v1701, %v1699
    %v1732 = vpack.c.bf16 %v1704, %v1702
    %v1733 = vpack.c.bf16 %v1705, %v1703
    %v1734 = vpack.c.bf16 %v1708, %v1706
    %v1735 = vpack.c.bf16 %v1709, %v1707
    %v1736 = vpack.c.bf16 %v1712, %v1710
    %v1737 = vpack.c.bf16 %v1713, %v1711
    %v1738 = vpack.c.bf16 %v1716, %v1714
    %v1739 = vpack.c.bf16 %v1717, %v1715
    %v1740 = vpack.c.bf16 %v1720, %v1718
    %v1741 = vpack.c.bf16 %v1721, %v1719
    %v1742 = vpack.c.bf16 %v1724, %v1722
    %v1743 = vpack.c.bf16 %v1725, %v1723
    %v1744 = vpack.c.bf16 %v1728, %v1726
    %v1745 = vpack.c.bf16 %v1729, %v1727
    %1746 = vrot.lane.b32.xlu0 %v1554, 112
    %v1747 = vpop.permute.xlu0 %1746
    %1748 = vrot.lane.b32.xlu0 %v1556, 112
    %v1749 = vpop.permute.xlu0 %1748
    %1750 = vrot.lane.b32.xlu0 %v1558, 112
    %v1751 = vpop.permute.xlu0 %1750
    %1752 = vrot.lane.b32.xlu0 %v1560, 112
    %v1753 = vpop.permute.xlu0 %1752
    %1754 = vrot.lane.b32.xlu0 %v1562, 112
    %v1755 = vpop.permute.xlu0 %1754
    %1756 = vrot.lane.b32.xlu0 %v1564, 112
    %v1757 = vpop.permute.xlu0 %1756
    %1758 = vrot.lane.b32.xlu0 %v1566, 112
    %v1759 = vpop.permute.xlu0 %1758
    %1760 = vrot.lane.b32.xlu0 %v1568, 112
    %v1761 = vpop.permute.xlu0 %1760
    %1762 = vrot.lane.b32.xlu0 %v1570, 112
    %v1763 = vpop.permute.xlu0 %1762
    %1764 = vrot.lane.b32.xlu0 %v1572, 112
    %v1765 = vpop.permute.xlu0 %1764
    %1766 = vrot.lane.b32.xlu0 %v1574, 112
    %v1767 = vpop.permute.xlu0 %1766
    %1768 = vrot.lane.b32.xlu0 %v1576, 112
    %v1769 = vpop.permute.xlu0 %1768
    %1770 = vrot.lane.b32.xlu0 %v1578, 112
    %v1771 = vpop.permute.xlu0 %1770
    %1772 = vrot.lane.b32.xlu0 %v1580, 112
    %v1773 = vpop.permute.xlu0 %1772
    %1774 = vrot.lane.b32.xlu0 %v1582, 112
    %v1775 = vpop.permute.xlu0 %1774
    %1776 = vrot.lane.b32.xlu0 %v1584, 112
    %v1777 = vpop.permute.xlu0 %1776
    %1778 = vrot.lane.b32.xlu0 %v1555, 112
    %v1779 = vpop.permute.xlu0 %1778
    %1780 = vrot.lane.b32.xlu0 %v1557, 112
    %v1781 = vpop.permute.xlu0 %1780
    %1782 = vrot.lane.b32.xlu0 %v1559, 112
    %v1783 = vpop.permute.xlu0 %1782
    %1784 = vrot.lane.b32.xlu0 %v1561, 112
    %v1785 = vpop.permute.xlu0 %1784
    %1786 = vrot.lane.b32.xlu0 %v1563, 112
    %v1787 = vpop.permute.xlu0 %1786
    %1788 = vrot.lane.b32.xlu0 %v1565, 112
    %v1789 = vpop.permute.xlu0 %1788
    %1790 = vrot.lane.b32.xlu0 %v1567, 112
    %v1791 = vpop.permute.xlu0 %1790
    %1792 = vrot.lane.b32.xlu0 %v1569, 112
    %v1793 = vpop.permute.xlu0 %1792
    %1794 = vrot.lane.b32.xlu0 %v1571, 112
    %v1795 = vpop.permute.xlu0 %1794
    %1796 = vrot.lane.b32.xlu0 %v1573, 112
    %v1797 = vpop.permute.xlu0 %1796
    %1798 = vrot.lane.b32.xlu0 %v1575, 112
    %v1799 = vpop.permute.xlu0 %1798
    %1800 = vrot.lane.b32.xlu0 %v1577, 112
    %v1801 = vpop.permute.xlu0 %1800
    %1802 = vrot.lane.b32.xlu0 %v1579, 112
    %v1803 = vpop.permute.xlu0 %1802
    %1804 = vrot.lane.b32.xlu0 %v1581, 112
    %v1805 = vpop.permute.xlu0 %1804
    %1806 = vrot.lane.b32.xlu0 %v1583, 112
    %v1807 = vpop.permute.xlu0 %1806
    %1808 = vrot.lane.b32.xlu0 %v1585, 112
    %v1809 = vpop.permute.xlu0 %1808
    %v1810 = vsel %vm432, %v1747, %v1779
    %v1811 = vsel %vm432, %v1749, %v1781
    %v1812 = vsel %vm432, %v1751, %v1783
    %v1813 = vsel %vm432, %v1753, %v1785
    %v1814 = vsel %vm432, %v1755, %v1787
    %v1815 = vsel %vm432, %v1757, %v1789
    %v1816 = vsel %vm432, %v1759, %v1791
    %v1817 = vsel %vm432, %v1761, %v1793
    %v1818 = vsel %vm432, %v1763, %v1795
    %v1819 = vsel %vm432, %v1765, %v1797
    %v1820 = vsel %vm432, %v1767, %v1799
    %v1821 = vsel %vm432, %v1769, %v1801
    %v1822 = vsel %vm432, %v1771, %v1803
    %v1823 = vsel %vm432, %v1773, %v1805
    %v1824 = vsel %vm432, %v1775, %v1807
    %v1825 = vsel %vm432, %v1777, %v1809
    %v1826 = vsel %vm432, %v1779, %v1747
    %v1827 = vsel %vm432, %v1781, %v1749
    %v1828 = vsel %vm432, %v1783, %v1751
    %v1829 = vsel %vm432, %v1785, %v1753
    %v1830 = vsel %vm432, %v1787, %v1755
    %v1831 = vsel %vm432, %v1789, %v1757
    %v1832 = vsel %vm432, %v1791, %v1759
    %v1833 = vsel %vm432, %v1793, %v1761
    %v1834 = vsel %vm432, %v1795, %v1763
    %v1835 = vsel %vm432, %v1797, %v1765
    %v1836 = vsel %vm432, %v1799, %v1767
    %v1837 = vsel %vm432, %v1801, %v1769
    %v1838 = vsel %vm432, %v1803, %v1771
    %v1839 = vsel %vm432, %v1805, %v1773
    %v1840 = vsel %vm432, %v1807, %v1775
    %v1841 = vsel %vm432, %v1809, %v1777
    %v1842 = vmul.f32 %v1810, %v144
    %v1843 = vmul.f32 %v1826, %v148
    %v1844 = vmul.f32 %v1811, %v144
    %v1845 = vmul.f32 %v1827, %v148
    %v1846 = vmul.f32 %v1812, %v144
    %v1847 = vmul.f32 %v1828, %v148
    %v1848 = vmul.f32 %v1813, %v144
    %v1849 = vmul.f32 %v1829, %v148
    %v1850 = vmul.f32 %v1814, %v144
    %v1851 = vmul.f32 %v1830, %v148
    %v1852 = vmul.f32 %v1815, %v144
    %v1853 = vmul.f32 %v1831, %v148
    %v1854 = vmul.f32 %v1816, %v144
    %v1855 = vmul.f32 %v1832, %v148
    %v1856 = vmul.f32 %v1817, %v144
    %v1857 = vmul.f32 %v1833, %v148
    %v1858 = vmul.f32 %v1818, %v144
    %v1859 = vmul.f32 %v1834, %v148
    %v1860 = vmul.f32 %v1819, %v144
    %v1861 = vmul.f32 %v1835, %v148
    %v1862 = vmul.f32 %v1820, %v144
    %v1863 = vmul.f32 %v1836, %v148
    %v1864 = vmul.f32 %v1821, %v144
    %v1865 = vmul.f32 %v1837, %v148
    %v1866 = vmul.f32 %v1822, %v144
    %v1867 = vmul.f32 %v1838, %v148
    %v1868 = vmul.f32 %v1823, %v144
    %v1869 = vmul.f32 %v1839, %v148
    %v1870 = vmul.f32 %v1824, %v144
    %v1871 = vmul.f32 %v1840, %v148
    %v1872 = vmul.f32 %v1825, %v144
    %v1873 = vmul.f32 %v1841, %v148
    %v1874 = vpack.c.bf16 %v1844, %v1842
    %v1875 = vpack.c.bf16 %v1845, %v1843
    %v1876 = vpack.c.bf16 %v1848, %v1846
    %v1877 = vpack.c.bf16 %v1849, %v1847
    %v1878 = vpack.c.bf16 %v1852, %v1850
    %v1879 = vpack.c.bf16 %v1853, %v1851
    %v1880 = vpack.c.bf16 %v1856, %v1854
    %v1881 = vpack.c.bf16 %v1857, %v1855
    %v1882 = vpack.c.bf16 %v1860, %v1858
    %v1883 = vpack.c.bf16 %v1861, %v1859
    %v1884 = vpack.c.bf16 %v1864, %v1862
    %v1885 = vpack.c.bf16 %v1865, %v1863
    %v1886 = vpack.c.bf16 %v1868, %v1866
    %v1887 = vpack.c.bf16 %v1869, %v1867
    %v1888 = vpack.c.bf16 %v1872, %v1870
    %v1889 = vpack.c.bf16 %v1873, %v1871
    %1890 = vmatprep.subr.bf16.mxu0 %v1731
    %1891 = vmatpush1.bf16.msra.mxu0 %v1730
    %1892 = vmatprep.subr.bf16.mxu0 %v1733
    %1893 = vmatpush1.bf16.msra.mxu0 %v1732
    %1894 = vmatprep.subr.bf16.mxu0 %v1735
    %1895 = vmatpush1.bf16.msra.mxu0 %v1734
    %1896 = vmatprep.subr.bf16.mxu0 %v1737
    %1897 = vmatpush1.bf16.msra.mxu0 %v1736
    %1898 = vmatprep.subr.bf16.mxu0 %v1739
    %1899 = vmatpush1.bf16.msra.mxu0 %v1738
    %1900 = vmatprep.subr.bf16.mxu0 %v1741
    %1901 = vmatpush1.bf16.msra.mxu0 %v1740
    %1902 = vmatprep.subr.bf16.mxu0 %v1743
    %1903 = vmatpush1.bf16.msra.mxu0 %v1742
    %1904 = vmatprep.subr.bf16.mxu0 %v1745
    %1905 = vmatpush1.bf16.msra.mxu0 %v1744
    %1906 = vmatprep.subr.bf16.mxu0 %v1587
    %1907 = vmatpush1.bf16.msra.mxu0 %v1586
    %1908 = vmatprep.subr.bf16.mxu0 %v1589
    %1909 = vmatpush1.bf16.msra.mxu0 %v1588
    %1910 = vmatprep.subr.bf16.mxu0 %v1591
    %1911 = vmatpush1.bf16.msra.mxu0 %v1590
    %1912 = vmatprep.subr.bf16.mxu0 %v1593
    %1913 = vmatpush1.bf16.msra.mxu0 %v1592
    %1914 = vmatprep.subr.bf16.mxu0 %v1595
    %1915 = vmatpush1.bf16.msra.mxu0 %v1594
    %1916 = vmatprep.subr.bf16.mxu0 %v1597
    %1917 = vmatpush1.bf16.msra.mxu0 %v1596
    %1918 = vmatprep.subr.bf16.mxu0 %v1599
    %1919 = vmatpush1.bf16.msra.mxu0 %v1598
    %1920 = vmatprep.subr.bf16.mxu0 %v1601
    %1921 = vmatpush1.bf16.msra.mxu0 %v1600
    %1922 = vmatprep.mubr.bf16.mxu0 %v634
    %1923 = vmatmul.mubr.bf16.gmra.mrb[0].mxu0 %v633
    %v1924 = vpop.f32.mrb[0].mxu0
    %v1925 = vadd.f32 0.0, %v1924
    %v1926 = vpop.f32.mrb[0].mxu0
    %v1927 = vadd.f32 0.0, %v1926
    %v1928 = vpop.f32.mrb[0].mxu0
    %v1929 = vadd.f32 0.0, %v1928
    %v1930 = vpop.f32.mrb[0].mxu0
    %v1931 = vadd.f32 0.0, %v1930
    %1932 = vmatprep.mubr.bf16.mxu0 %v637
    %1933 = vmatmul.mubr.bf16.gmra.mrb[0].mxu0 %v636
    %v1934 = vpop.f32.mrb[0].mxu0
    %v1935 = vadd.f32 0.0, %v1934
    %v1936 = vpop.f32.mrb[0].mxu0
    %v1937 = vadd.f32 0.0, %v1936
    %v1938 = vpop.f32.mrb[0].mxu0
    %v1939 = vadd.f32 0.0, %v1938
    %v1940 = vpop.f32.mrb[0].mxu0
    %v1941 = vadd.f32 0.0, %v1940
    %1942 = vmatprep.mubr.bf16.mxu0 %v640
    %1943 = vmatmul.mubr.bf16.gmra.mrb[0].mxu0 %v639
    %v1944 = vpop.f32.mrb[0].mxu0
    %v1945 = vadd.f32 0.0, %v1944
    %v1946 = vpop.f32.mrb[0].mxu0
    %v1947 = vadd.f32 0.0, %v1946
    %v1948 = vpop.f32.mrb[0].mxu0
    %v1949 = vadd.f32 0.0, %v1948
    %v1950 = vpop.f32.mrb[0].mxu0
    %v1951 = vadd.f32 0.0, %v1950
    %1952 = vmatprep.mubr.bf16.mxu0 %v643
    %1953 = vmatmul.mubr.bf16.gmra.mrb[0].mxu0 %v642
    %v1954 = vpop.f32.mrb[0].mxu0
    %v1955 = vadd.f32 0.0, %v1954
    %v1956 = vpop.f32.mrb[0].mxu0
    %v1957 = vadd.f32 0.0, %v1956
    %v1958 = vpop.f32.mrb[0].mxu0
    %v1959 = vadd.f32 0.0, %v1958
    %v1960 = vpop.f32.mrb[0].mxu0
    %v1961 = vadd.f32 0.0, %v1960
    %1962 = vmatprep.mubr.bf16.mxu0 %v646
    %1963 = vmatmul.mubr.bf16.gmra.mrb[0].mxu0 %v645
    %v1964 = vpop.f32.mrb[0].mxu0
    %v1965 = vadd.f32 0.0, %v1964
    %v1966 = vpop.f32.mrb[0].mxu0
    %v1967 = vadd.f32 0.0, %v1966
    %v1968 = vpop.f32.mrb[0].mxu0
    %v1969 = vadd.f32 0.0, %v1968
    %v1970 = vpop.f32.mrb[0].mxu0
    %v1971 = vadd.f32 0.0, %v1970
    %1972 = vmatprep.mubr.bf16.mxu0 %v649
    %1973 = vmatmul.mubr.bf16.gmra.mrb[0].mxu0 %v648
    %v1974 = vpop.f32.mrb[0].mxu0
    %v1975 = vadd.f32 0.0, %v1974
    %v1976 = vpop.f32.mrb[0].mxu0
    %v1977 = vadd.f32 0.0, %v1976
    %v1978 = vpop.f32.mrb[0].mxu0
    %v1979 = vadd.f32 0.0, %v1978
    %v1980 = vpop.f32.mrb[0].mxu0
    %v1981 = vadd.f32 0.0, %v1980
    %1982 = vmatprep.mubr.bf16.mxu0 %v652
    %1983 = vmatmul.mubr.bf16.gmra.mrb[0].mxu0 %v651
    %v1984 = vpop.f32.mrb[0].mxu0
    %v1985 = vadd.f32 0.0, %v1984
    %v1986 = vpop.f32.mrb[0].mxu0
    %v1987 = vadd.f32 0.0, %v1986
    %v1988 = vpop.f32.mrb[0].mxu0
    %v1989 = vadd.f32 0.0, %v1988
    %v1990 = vpop.f32.mrb[0].mxu0
    %v1991 = vadd.f32 0.0, %v1990
    %1992 = vmatprep.mubr.bf16.mxu0 %v655
    %1993 = vmatmul.mubr.bf16.gmra.mrb[0].mxu0 %v654
    %v1994 = vpop.f32.mrb[0].mxu0
    %v1995 = vadd.f32 0.0, %v1994
    %v1996 = vpop.f32.mrb[0].mxu0
    %v1997 = vadd.f32 0.0, %v1996
    %v1998 = vpop.f32.mrb[0].mxu0
    %v1999 = vadd.f32 0.0, %v1998
    %v2000 = vpop.f32.mrb[0].mxu0
    %v2001 = vadd.f32 0.0, %v2000
    %2002 = vmatprep.mubr.bf16.mxu0 %v658
    %2003 = vmatmul.mubr.bf16.gmra.mrb[0].mxu0 %v657
    %v2004 = vpop.f32.mrb[0].mxu0
    %v2005 = vadd.f32 0.0, %v2004
    %v2006 = vpop.f32.mrb[0].mxu0
    %v2007 = vadd.f32 0.0, %v2006
    %v2008 = vpop.f32.mrb[0].mxu0
    %v2009 = vadd.f32 0.0, %v2008
    %v2010 = vpop.f32.mrb[0].mxu0
    %v2011 = vadd.f32 0.0, %v2010
    %2012 = vmatprep.mubr.bf16.mxu0 %v661
    %2013 = vmatmul.mubr.bf16.gmra.mrb[0].mxu0 %v660
    %v2014 = vpop.f32.mrb[0].mxu0
    %v2015 = vadd.f32 0.0, %v2014
    %v2016 = vpop.f32.mrb[0].mxu0
    %v2017 = vadd.f32 0.0, %v2016
    %v2018 = vpop.f32.mrb[0].mxu0
    %v2019 = vadd.f32 0.0, %v2018
    %v2020 = vpop.f32.mrb[0].mxu0
    %v2021 = vadd.f32 0.0, %v2020
    %2022 = vmatprep.mubr.bf16.mxu0 %v664
    %2023 = vmatmul.mubr.bf16.gmra.mrb[0].mxu0 %v663
    %v2024 = vpop.f32.mrb[0].mxu0
    %v2025 = vadd.f32 0.0, %v2024
    %v2026 = vpop.f32.mrb[0].mxu0
    %v2027 = vadd.f32 0.0, %v2026
    %v2028 = vpop.f32.mrb[0].mxu0
    %v2029 = vadd.f32 0.0, %v2028
    %v2030 = vpop.f32.mrb[0].mxu0
    %v2031 = vadd.f32 0.0, %v2030
    %2032 = vmatprep.mubr.bf16.mxu0 %v667
    %2033 = vmatmul.mubr.bf16.gmra.mrb[0].mxu0 %v666
    %v2034 = vpop.f32.mrb[0].mxu0
    %v2035 = vadd.f32 0.0, %v2034
    %v2036 = vpop.f32.mrb[0].mxu0
    %v2037 = vadd.f32 0.0, %v2036
    %v2038 = vpop.f32.mrb[0].mxu0
    %v2039 = vadd.f32 0.0, %v2038
    %v2040 = vpop.f32.mrb[0].mxu0
    %v2041 = vadd.f32 0.0, %v2040
    %2042 = vdwg.mxu0
    %2043 = vmatprep.subr.bf16.mxu0 %v1875
    %2044 = vmatpush1.bf16.msra.mxu0 %v1874
    %2045 = vmatprep.subr.bf16.mxu0 %v1877
    %2046 = vmatpush1.bf16.msra.mxu0 %v1876
    %2047 = vmatprep.subr.bf16.mxu0 %v1879
    %2048 = vmatpush1.bf16.msra.mxu0 %v1878
    %2049 = vmatprep.subr.bf16.mxu0 %v1881
    %2050 = vmatpush1.bf16.msra.mxu0 %v1880
    %2051 = vmatprep.subr.bf16.mxu0 %v1883
    %2052 = vmatpush1.bf16.msra.mxu0 %v1882
    %2053 = vmatprep.subr.bf16.mxu0 %v1885
    %2054 = vmatpush1.bf16.msra.mxu0 %v1884
    %2055 = vmatprep.subr.bf16.mxu0 %v1887
    %2056 = vmatpush1.bf16.msra.mxu0 %v1886
    %2057 = vmatprep.subr.bf16.mxu0 %v1889
    %2058 = vmatpush1.bf16.msra.mxu0 %v1888
    %2059 = vmatprep.subr.bf16.mxu0 0
    %2060 = vmatpush1.bf16.msra.mxu0 0
    %2061 = vmatprep.subr.bf16.mxu0 0
    %2062 = vmatpush1.bf16.msra.mxu0 0
    %2063 = vmatprep.subr.bf16.mxu0 0
    %2064 = vmatpush1.bf16.msra.mxu0 0
    %2065 = vmatprep.subr.bf16.mxu0 0
    %2066 = vmatpush1.bf16.msra.mxu0 0
    %2067 = vmatprep.subr.bf16.mxu0 0
    %2068 = vmatpush1.bf16.msra.mxu0 0
    %2069 = vmatprep.subr.bf16.mxu0 0
    %2070 = vmatpush1.bf16.msra.mxu0 0
    %2071 = vmatprep.subr.bf16.mxu0 0
    %2072 = vmatpush1.bf16.msra.mxu0 0
    %2073 = vmatprep.subr.bf16.mxu0 0
    %2074 = vmatpush1.bf16.msra.mxu0 0
    %2075 = vmatprep.mubr.bf16.mxu0 0
    %2076 = vmatmul.mubr.bf16.gmra.mrb[0].mxu0 %v635
    %v2077 = vpop.f32.mrb[0].mxu0
    %v2078 = vadd.f32 %v1925, %v2077
    %v2079 = vpop.f32.mrb[0].mxu0
    %v2080 = vadd.f32 %v1927, %v2079
    %v2081 = vpop.f32.mrb[0].mxu0
    %v2082 = vadd.f32 %v1929, %v2081
    %v2083 = vpop.f32.mrb[0].mxu0
    %v2084 = vadd.f32 %v1931, %v2083
    %2085 = vmatprep.mubr.bf16.mxu0 0
    %2086 = vmatmul.mubr.bf16.gmra.mrb[0].mxu0 %v638
    %v2087 = vpop.f32.mrb[0].mxu0
    %v2088 = vadd.f32 %v1935, %v2087
    %v2089 = vpop.f32.mrb[0].mxu0
    %v2090 = vadd.f32 %v1937, %v2089
    %v2091 = vpop.f32.mrb[0].mxu0
    %v2092 = vadd.f32 %v1939, %v2091
    %v2093 = vpop.f32.mrb[0].mxu0
    %v2094 = vadd.f32 %v1941, %v2093
    %2095 = vmatprep.mubr.bf16.mxu0 0
    %2096 = vmatmul.mubr.bf16.gmra.mrb[0].mxu0 %v641
    %v2097 = vpop.f32.mrb[0].mxu0
    %v2098 = vadd.f32 %v1945, %v2097
    %v2099 = vpop.f32.mrb[0].mxu0
    %v2100 = vadd.f32 %v1947, %v2099
    %v2101 = vpop.f32.mrb[0].mxu0
    %v2102 = vadd.f32 %v1949, %v2101
    %v2103 = vpop.f32.mrb[0].mxu0
    %v2104 = vadd.f32 %v1951, %v2103
    %2105 = vmatprep.mubr.bf16.mxu0 0
    %2106 = vmatmul.mubr.bf16.gmra.mrb[0].mxu0 %v644
    %v2107 = vpop.f32.mrb[0].mxu0
    %v2108 = vadd.f32 %v1955, %v2107
    %v2109 = vpop.f32.mrb[0].mxu0
    %v2110 = vadd.f32 %v1957, %v2109
    %v2111 = vpop.f32.mrb[0].mxu0
    %v2112 = vadd.f32 %v1959, %v2111
    %v2113 = vpop.f32.mrb[0].mxu0
    %v2114 = vadd.f32 %v1961, %v2113
    %2115 = vmatprep.mubr.bf16.mxu0 0
    %2116 = vmatmul.mubr.bf16.gmra.mrb[0].mxu0 %v647
    %v2117 = vpop.f32.mrb[0].mxu0
    %v2118 = vadd.f32 %v1965, %v2117
    %v2119 = vpop.f32.mrb[0].mxu0
    %v2120 = vadd.f32 %v1967, %v2119
    %v2121 = vpop.f32.mrb[0].mxu0
    %v2122 = vadd.f32 %v1969, %v2121
    %v2123 = vpop.f32.mrb[0].mxu0
    %v2124 = vadd.f32 %v1971, %v2123
    %2125 = vmatprep.mubr.bf16.mxu0 0
    %2126 = vmatmul.mubr.bf16.gmra.mrb[0].mxu0 %v650
    %v2127 = vpop.f32.mrb[0].mxu0
    %v2128 = vadd.f32 %v1975, %v2127
    %v2129 = vpop.f32.mrb[0].mxu0
    %v2130 = vadd.f32 %v1977, %v2129
    %v2131 = vpop.f32.mrb[0].mxu0
    %v2132 = vadd.f32 %v1979, %v2131
    %v2133 = vpop.f32.mrb[0].mxu0
    %v2134 = vadd.f32 %v1981, %v2133
    %2135 = vmatprep.mubr.bf16.mxu0 0
    %2136 = vmatmul.mubr.bf16.gmra.mrb[0].mxu0 %v653
    %v2137 = vpop.f32.mrb[0].mxu0
    %v2138 = vadd.f32 %v1985, %v2137
    %v2139 = vpop.f32.mrb[0].mxu0
    %v2140 = vadd.f32 %v1987, %v2139
    %v2141 = vpop.f32.mrb[0].mxu0
    %v2142 = vadd.f32 %v1989, %v2141
    %v2143 = vpop.f32.mrb[0].mxu0
    %v2144 = vadd.f32 %v1991, %v2143
    %2145 = vmatprep.mubr.bf16.mxu0 0
    %2146 = vmatmul.mubr.bf16.gmra.mrb[0].mxu0 %v656
    %v2147 = vpop.f32.mrb[0].mxu0
    %v2148 = vadd.f32 %v1995, %v2147
    %v2149 = vpop.f32.mrb[0].mxu0
    %v2150 = vadd.f32 %v1997, %v2149
    %v2151 = vpop.f32.mrb[0].mxu0
    %v2152 = vadd.f32 %v1999, %v2151
    %v2153 = vpop.f32.mrb[0].mxu0
    %v2154 = vadd.f32 %v2001, %v2153
    %2155 = vmatprep.mubr.bf16.mxu0 0
    %2156 = vmatmul.mubr.bf16.gmra.mrb[0].mxu0 %v659
    %v2157 = vpop.f32.mrb[0].mxu0
    %v2158 = vadd.f32 %v2005, %v2157
    %v2159 = vpop.f32.mrb[0].mxu0
    %v2160 = vadd.f32 %v2007, %v2159
    %v2161 = vpop.f32.mrb[0].mxu0
    %v2162 = vadd.f32 %v2009, %v2161
    %v2163 = vpop.f32.mrb[0].mxu0
    %v2164 = vadd.f32 %v2011, %v2163
    %2165 = vmatprep.mubr.bf16.mxu0 0
    %2166 = vmatmul.mubr.bf16.gmra.mrb[0].mxu0 %v662
    %v2167 = vpop.f32.mrb[0].mxu0
    %v2168 = vadd.f32 %v2015, %v2167
    %v2169 = vpop.f32.mrb[0].mxu0
    %v2170 = vadd.f32 %v2017, %v2169
    %v2171 = vpop.f32.mrb[0].mxu0
    %v2172 = vadd.f32 %v2019, %v2171
    %v2173 = vpop.f32.mrb[0].mxu0
    %v2174 = vadd.f32 %v2021, %v2173
    %2175 = vmatprep.mubr.bf16.mxu0 0
    %2176 = vmatmul.mubr.bf16.gmra.mrb[0].mxu0 %v665
    %v2177 = vpop.f32.mrb[0].mxu0
    %v2178 = vadd.f32 %v2025, %v2177
    %v2179 = vpop.f32.mrb[0].mxu0
    %v2180 = vadd.f32 %v2027, %v2179
    %v2181 = vpop.f32.mrb[0].mxu0
    %v2182 = vadd.f32 %v2029, %v2181
    %v2183 = vpop.f32.mrb[0].mxu0
    %v2184 = vadd.f32 %v2031, %v2183
    %2185 = vmatprep.mubr.bf16.mxu0 0
    %2186 = vmatmul.mubr.bf16.gmra.mrb[0].mxu0 %v668
    %v2187 = vpop.f32.mrb[0].mxu0
    %v2188 = vadd.f32 %v2035, %v2187
    %v2189 = vpop.f32.mrb[0].mxu0
    %v2190 = vadd.f32 %v2037, %v2189
    %v2191 = vpop.f32.mrb[0].mxu0
    %v2192 = vadd.f32 %v2039, %v2191
    %v2193 = vpop.f32.mrb[0].mxu0
    %v2194 = vadd.f32 %v2041, %v2193
    %2195 = vdwg.mxu0
    %2196 = vrot.lane.b32.xlu0 %v2078, 1
    %v2197 = vpop.permute.xlu0 %2196
    %2198 = vrot.lane.b32.xlu0 %v2082, 1
    %v2199 = vpop.permute.xlu0 %2198
    %2200 = vrot.lane.b32.xlu0 %v2088, 1
    %v2201 = vpop.permute.xlu0 %2200
    %2202 = vrot.lane.b32.xlu0 %v2092, 1
    %v2203 = vpop.permute.xlu0 %2202
    %2204 = vrot.lane.b32.xlu0 %v2098, 1
    %v2205 = vpop.permute.xlu0 %2204
    %2206 = vrot.lane.b32.xlu0 %v2102, 1
    %v2207 = vpop.permute.xlu0 %2206
    %2208 = vrot.lane.b32.xlu0 %v2108, 1
    %v2209 = vpop.permute.xlu0 %2208
    %2210 = vrot.lane.b32.xlu0 %v2112, 1
    %v2211 = vpop.permute.xlu0 %2210
    %2212 = vrot.lane.b32.xlu0 %v2080, 1
    %v2213 = vpop.permute.xlu0 %2212
    %2214 = vrot.lane.b32.xlu0 %v2084, 1
    %v2215 = vpop.permute.xlu0 %2214
    %2216 = vrot.lane.b32.xlu0 %v2090, 1
    %v2217 = vpop.permute.xlu0 %2216
    %2218 = vrot.lane.b32.xlu0 %v2094, 1
    %v2219 = vpop.permute.xlu0 %2218
    %2220 = vrot.lane.b32.xlu0 %v2100, 1
    %v2221 = vpop.permute.xlu0 %2220
    %2222 = vrot.lane.b32.xlu0 %v2104, 1
    %v2223 = vpop.permute.xlu0 %2222
    %2224 = vrot.lane.b32.xlu0 %v2110, 1
    %v2225 = vpop.permute.xlu0 %2224
    %2226 = vrot.lane.b32.xlu0 %v2114, 1
    %v2227 = vpop.permute.xlu0 %2226
    %v2228 = vsel %vm1043, %v2197, %v2213
    %v2229 = vsel %vm1043, %v2199, %v2215
    %v2230 = vsel %vm1043, %v2201, %v2217
    %v2231 = vsel %vm1043, %v2203, %v2219
    %v2232 = vsel %vm1043, %v2205, %v2221
    %v2233 = vsel %vm1043, %v2207, %v2223
    %v2234 = vsel %vm1043, %v2209, %v2225
    %v2235 = vsel %vm1043, %v2211, %v2227
    %v2236 = vsel %vm1043, %v2213, %v2197
    %v2237 = vsel %vm1043, %v2215, %v2199
    %v2238 = vsel %vm1043, %v2217, %v2201
    %v2239 = vsel %vm1043, %v2219, %v2203
    %v2240 = vsel %vm1043, %v2221, %v2205
    %v2241 = vsel %vm1043, %v2223, %v2207
    %v2242 = vsel %vm1043, %v2225, %v2209
    %v2243 = vsel %vm1043, %v2227, %v2211
    %v2244 = vmul.f32 %v2236, %v155
    %v2245 = vmul.f32 %v2228, %v159
    %v2246 = vmul.f32 %v2237, %v155
    %v2247 = vmul.f32 %v2229, %v159
    %v2248 = vmul.f32 %v2238, %v155
    %v2249 = vmul.f32 %v2230, %v159
    %v2250 = vmul.f32 %v2239, %v155
    %v2251 = vmul.f32 %v2231, %v159
    %v2252 = vmul.f32 %v2240, %v155
    %v2253 = vmul.f32 %v2232, %v159
    %v2254 = vmul.f32 %v2241, %v155
    %v2255 = vmul.f32 %v2233, %v159
    %v2256 = vmul.f32 %v2242, %v155
    %v2257 = vmul.f32 %v2234, %v159
    %v2258 = vmul.f32 %v2243, %v155
    %v2259 = vmul.f32 %v2235, %v159
    %v2260 = vadd.f32 %v2118, %v2244
    %v2261 = vadd.f32 %v2120, %v2245
    %v2262 = vadd.f32 %v2122, %v2246
    %v2263 = vadd.f32 %v2124, %v2247
    %v2264 = vadd.f32 %v2128, %v2248
    %v2265 = vadd.f32 %v2130, %v2249
    %v2266 = vadd.f32 %v2132, %v2250
    %v2267 = vadd.f32 %v2134, %v2251
    %v2268 = vadd.f32 %v2138, %v2252
    %v2269 = vadd.f32 %v2140, %v2253
    %v2270 = vadd.f32 %v2142, %v2254
    %v2271 = vadd.f32 %v2144, %v2255
    %v2272 = vadd.f32 %v2148, %v2256
    %v2273 = vadd.f32 %v2150, %v2257
    %v2274 = vadd.f32 %v2152, %v2258
    %v2275 = vadd.f32 %v2154, %v2259
    %2276 = vrot.lane.b32.xlu0 %v2158, 127
    %v2277 = vpop.permute.xlu0 %2276
    %2278 = vrot.lane.b32.xlu0 %v2162, 127
    %v2279 = vpop.permute.xlu0 %2278
    %2280 = vrot.lane.b32.xlu0 %v2168, 127
    %v2281 = vpop.permute.xlu0 %2280
    %2282 = vrot.lane.b32.xlu0 %v2172, 127
    %v2283 = vpop.permute.xlu0 %2282
    %2284 = vrot.lane.b32.xlu0 %v2178, 127
    %v2285 = vpop.permute.xlu0 %2284
    %2286 = vrot.lane.b32.xlu0 %v2182, 127
    %v2287 = vpop.permute.xlu0 %2286
    %2288 = vrot.lane.b32.xlu0 %v2188, 127
    %v2289 = vpop.permute.xlu0 %2288
    %2290 = vrot.lane.b32.xlu0 %v2192, 127
    %v2291 = vpop.permute.xlu0 %2290
    %2292 = vrot.lane.b32.xlu0 %v2160, 127
    %v2293 = vpop.permute.xlu0 %2292
    %2294 = vrot.lane.b32.xlu0 %v2164, 127
    %v2295 = vpop.permute.xlu0 %2294
    %2296 = vrot.lane.b32.xlu0 %v2170, 127
    %v2297 = vpop.permute.xlu0 %2296
    %2298 = vrot.lane.b32.xlu0 %v2174, 127
    %v2299 = vpop.permute.xlu0 %2298
    %2300 = vrot.lane.b32.xlu0 %v2180, 127
    %v2301 = vpop.permute.xlu0 %2300
    %2302 = vrot.lane.b32.xlu0 %v2184, 127
    %v2303 = vpop.permute.xlu0 %2302
    %2304 = vrot.lane.b32.xlu0 %v2190, 127
    %v2305 = vpop.permute.xlu0 %2304
    %2306 = vrot.lane.b32.xlu0 %v2194, 127
    %v2307 = vpop.permute.xlu0 %2306
    %v2308 = vsel %vm1124, %v2277, %v2293
    %v2309 = vsel %vm1124, %v2279, %v2295
    %v2310 = vsel %vm1124, %v2281, %v2297
    %v2311 = vsel %vm1124, %v2283, %v2299
    %v2312 = vsel %vm1124, %v2285, %v2301
    %v2313 = vsel %vm1124, %v2287, %v2303
    %v2314 = vsel %vm1124, %v2289, %v2305
    %v2315 = vsel %vm1124, %v2291, %v2307
    %v2316 = vsel %vm1124, %v2293, %v2277
    %v2317 = vsel %vm1124, %v2295, %v2279
    %v2318 = vsel %vm1124, %v2297, %v2281
    %v2319 = vsel %vm1124, %v2299, %v2283
    %v2320 = vsel %vm1124, %v2301, %v2285
    %v2321 = vsel %vm1124, %v2303, %v2287
    %v2322 = vsel %vm1124, %v2305, %v2289
    %v2323 = vsel %vm1124, %v2307, %v2291
    %v2324 = vmul.f32 %v2308, %v166
    %v2325 = vmul.f32 %v2316, %v170
    %v2326 = vmul.f32 %v2309, %v166
    %v2327 = vmul.f32 %v2317, %v170
    %v2328 = vmul.f32 %v2310, %v166
    %v2329 = vmul.f32 %v2318, %v170
    %v2330 = vmul.f32 %v2311, %v166
    %v2331 = vmul.f32 %v2319, %v170
    %v2332 = vmul.f32 %v2312, %v166
    %v2333 = vmul.f32 %v2320, %v170
    %v2334 = vmul.f32 %v2313, %v166
    %v2335 = vmul.f32 %v2321, %v170
    %v2336 = vmul.f32 %v2314, %v166
    %v2337 = vmul.f32 %v2322, %v170
    %v2338 = vmul.f32 %v2315, %v166
    %v2339 = vmul.f32 %v2323, %v170
    %v2340 = vadd.f32 %v2260, %v2324
    %v2341 = vadd.f32 %v2261, %v2325
    %v2342 = vadd.f32 %v2262, %v2326
    %v2343 = vadd.f32 %v2263, %v2327
    %v2344 = vadd.f32 %v2264, %v2328
    %v2345 = vadd.f32 %v2265, %v2329
    %v2346 = vadd.f32 %v2266, %v2330
    %v2347 = vadd.f32 %v2267, %v2331
    %v2348 = vadd.f32 %v2268, %v2332
    %v2349 = vadd.f32 %v2269, %v2333
    %v2350 = vadd.f32 %v2270, %v2334
    %v2351 = vadd.f32 %v2271, %v2335
    %v2352 = vadd.f32 %v2272, %v2336
    %v2353 = vadd.f32 %v2273, %v2337
    %v2354 = vadd.f32 %v2274, %v2338
    %v2355 = vadd.f32 %v2275, %v2339
    %v2356 = vadd.f32 %v2340, %v1176
    %v2357 = vadd.f32 %v2341, %v1176
    %v2358 = vadd.f32 %v2342, %v1181
    %v2359 = vadd.f32 %v2343, %v1181
    %v2360 = vadd.f32 %v2344, %v1186
    %v2361 = vadd.f32 %v2345, %v1186
    %v2362 = vadd.f32 %v2346, %v1191
    %v2363 = vadd.f32 %v2347, %v1191
    %v2364 = vadd.f32 %v2348, %v1196
    %v2365 = vadd.f32 %v2349, %v1196
    %v2366 = vadd.f32 %v2350, %v1201
    %v2367 = vadd.f32 %v2351, %v1201
    %v2368 = vadd.f32 %v2352, %v1206
    %v2369 = vadd.f32 %v2353, %v1206
    %v2370 = vadd.f32 %v2354, %v1211
    %v2371 = vadd.f32 %v2355, %v1211
    %v2372 = vmax.f32 %v2356, 0.0
    %v2373 = vmax.f32 %v2357, 0.0
    %v2374 = vmax.f32 %v2358, 0.0
    %v2375 = vmax.f32 %v2359, 0.0
    %v2376 = vmax.f32 %v2360, 0.0
    %v2377 = vmax.f32 %v2361, 0.0
    %v2378 = vmax.f32 %v2362, 0.0
    %v2379 = vmax.f32 %v2363, 0.0
    %v2380 = vmax.f32 %v2364, 0.0
    %v2381 = vmax.f32 %v2365, 0.0
    %v2382 = vmax.f32 %v2366, 0.0
    %v2383 = vmax.f32 %v2367, 0.0
    %v2384 = vmax.f32 %v2368, 0.0
    %v2385 = vmax.f32 %v2369, 0.0
    %v2386 = vmax.f32 %v2370, 0.0
    %v2387 = vmax.f32 %v2371, 0.0
    %v2388 = vpack.c.bf16 %v2374, %v2372
    %v2389 = vpack.c.bf16 %v2375, %v2373
    %v2390 = vpack.c.bf16 %v2378, %v2376
    %v2391 = vpack.c.bf16 %v2379, %v2377
    %v2392 = vpack.c.bf16 %v2382, %v2380
    %v2393 = vpack.c.bf16 %v2383, %v2381
    %v2394 = vpack.c.bf16 %v2386, %v2384
    %v2395 = vpack.c.bf16 %v2387, %v2385
    %2396 = vmatprep.subr.bf16.mxu0 %v2389
    %2397 = vmatpush1.bf16.msra.mxu0 %v2388
    %2398 = vmatprep.subr.bf16.mxu0 %v2391
    %2399 = vmatpush1.bf16.msra.mxu0 %v2390
    %2400 = vmatprep.subr.bf16.mxu0 %v2393
    %2401 = vmatpush1.bf16.msra.mxu0 %v2392
    %2402 = vmatprep.subr.bf16.mxu0 %v2395
    %2403 = vmatpush1.bf16.msra.mxu0 %v2394
    %2404 = vmatprep.subr.bf16.mxu0 0
    %2405 = vmatpush1.bf16.msra.mxu0 0
    %2406 = vmatprep.subr.bf16.mxu0 0
    %2407 = vmatpush1.bf16.msra.mxu0 0
    %2408 = vmatprep.subr.bf16.mxu0 0
    %2409 = vmatpush1.bf16.msra.mxu0 0
    %2410 = vmatprep.subr.bf16.mxu0 0
    %2411 = vmatpush1.bf16.msra.mxu0 0
    %2412 = vmatprep.subr.bf16.mxu0 0
    %2413 = vmatpush1.bf16.msra.mxu0 0
    %2414 = vmatprep.subr.bf16.mxu0 0
    %2415 = vmatpush1.bf16.msra.mxu0 0
    %2416 = vmatprep.subr.bf16.mxu0 0
    %2417 = vmatpush1.bf16.msra.mxu0 0
    %2418 = vmatprep.subr.bf16.mxu0 0
    %2419 = vmatpush1.bf16.msra.mxu0 0
    %2420 = vmatprep.subr.bf16.mxu0 0
    %2421 = vmatpush1.bf16.msra.mxu0 0
    %2422 = vmatprep.subr.bf16.mxu0 0
    %2423 = vmatpush1.bf16.msra.mxu0 0
    %2424 = vmatprep.subr.bf16.mxu0 0
    %2425 = vmatpush1.bf16.msra.mxu0 0
    %2426 = vmatprep.subr.bf16.mxu0 0
    %2427 = vmatpush1.bf16.msra.mxu0 0
    %2428 = vmatprep.mubr.bf16.mxu0 0
    %2429 = vmatmul.mubr.bf16.gmra.mrb[0].mxu0 %v1260
    %v2430 = vpop.f32.mrb[0].mxu0
    %v2431 = vadd.f32 0.0, %v2430
    %v2432 = vpop.f32.mrb[0].mxu0
    %v2433 = vadd.f32 0.0, %v2432
    %v2434 = vpop.f32.mrb[0].mxu0
    %v2435 = vadd.f32 0.0, %v2434
    %v2436 = vpop.f32.mrb[0].mxu0
    %v2437 = vadd.f32 0.0, %v2436
    %2438 = vdwg.mxu0
    %2439 = vrot.lane.b32.xlu0 %v2431, 17
    %v2440 = vpop.permute.xlu0 %2439
    %2441 = vrot.lane.b32.xlu0 %v2433, 17
    %v2442 = vpop.permute.xlu0 %2441
    %v2443 = vsel %vm1309, %v2440, %v2442
    %v2444 = vsel %vm1309, %v2442, %v2440
    %v2445 = vmul.f32 %v2444, %v1316
    %v2446 = vmul.f32 %v2443, %v1320
    %v2449 = vrot.slane %v2445, 4
    %v2450 = vrot.slane %v2446, 4
    %v2453 = vadd.f32 %v2431, %v2449
    %v2454 = vadd.f32 %v2433, %v2450
    %v2457 = vrot.slane %v2431, 1
    %v2458 = vrot.slane %v2433, 1
    %2461 = vrot.lane.b32.xlu0 %v2457, 16
    %v2462 = vpop.permute.xlu0 %2461
    %2463 = vrot.lane.b32.xlu0 %v2458, 16
    %v2464 = vpop.permute.xlu0 %2463
    %v2465 = vsel %vm287, %v2462, %v2464
    %v2466 = vsel %vm287, %v2464, %v2462
    %v2467 = vmul.f32 %v2466, %v133
    %v2468 = vmul.f32 %v2465, %v137
    %v2471 = vrot.slane %v2467, 4
    %v2472 = vrot.slane %v2468, 4
    %v2475 = vadd.f32 %v2453, %v2471
    %v2476 = vadd.f32 %v2454, %v2472
    %v2477 = vrot.slane %v2431, 2
    %v2478 = vrot.slane %v2433, 2
    %2481 = vrot.lane.b32.xlu0 %v2477, 15
    %v2482 = vpop.permute.xlu0 %2481
    %2483 = vrot.lane.b32.xlu0 %v2478, 15
    %v2484 = vpop.permute.xlu0 %2483
    %v2485 = vsel %vm1363, %v2482, %v2484
    %v2486 = vsel %vm1363, %v2484, %v2482
    %v2487 = vmul.f32 %v2486, %v1370
    %v2488 = vmul.f32 %v2485, %v1374
    %v2491 = vrot.slane %v2487, 4
    %v2492 = vrot.slane %v2488, 4
    %v2495 = vadd.f32 %v2475, %v2491
    %v2496 = vadd.f32 %v2476, %v2492
    %v2497 = vrot.slane %v2431, 3
    %v2498 = vrot.slane %v2433, 3
    %2501 = vrot.lane.b32.xlu0 %v2497, 1
    %v2502 = vpop.permute.xlu0 %2501
    %2503 = vrot.lane.b32.xlu0 %v2498, 1
    %v2504 = vpop.permute.xlu0 %2503
    %v2505 = vsel %vm1043, %v2502, %v2504
    %v2506 = vsel %vm1043, %v2504, %v2502
    %v2507 = vmul.f32 %v2506, %v155
    %v2508 = vmul.f32 %v2505, %v159
    %v2511 = vrot.slane %v2507, 4
    %v2512 = vrot.slane %v2508, 4
    %v2515 = vadd.f32 %v2495, %v2511
    %v2516 = vadd.f32 %v2496, %v2512
    %v2517 = vrot.slane %v2431, 5
    %v2518 = vrot.slane %v2433, 5
    %2521 = vrot.lane.b32.xlu0 %v2517, 127
    %v2522 = vpop.permute.xlu0 %2521
    %2523 = vrot.lane.b32.xlu0 %v2518, 127
    %v2524 = vpop.permute.xlu0 %2523
    %v2525 = vsel %vm1124, %v2522, %v2524
    %v2526 = vsel %vm1124, %v2524, %v2522
    %v2527 = vmul.f32 %v2525, %v166
    %v2528 = vmul.f32 %v2526, %v170
    %v2531 = vrot.slane %v2527, 4
    %v2532 = vrot.slane %v2528, 4
    %v2535 = vadd.f32 %v2515, %v2531
    %v2536 = vadd.f32 %v2516, %v2532
    %v2537 = vrot.slane %v2431, 6
    %v2538 = vrot.slane %v2433, 6
    %2541 = vrot.lane.b32.xlu0 %v2537, 113
    %v2542 = vpop.permute.xlu0 %2541
    %2543 = vrot.lane.b32.xlu0 %v2538, 113
    %v2544 = vpop.permute.xlu0 %2543
    %v2545 = vsel %vm1435, %v2542, %v2544
    %v2546 = vsel %vm1435, %v2544, %v2542
    %v2547 = vmul.f32 %v2545, %v1442
    %v2548 = vmul.f32 %v2546, %v1446
    %v2551 = vrot.slane %v2547, 4
    %v2552 = vrot.slane %v2548, 4
    %v2555 = vadd.f32 %v2535, %v2551
    %v2556 = vadd.f32 %v2536, %v2552
    %v2557 = vrot.slane %v2431, 7
    %v2558 = vrot.slane %v2433, 7
    %2561 = vrot.lane.b32.xlu0 %v2557, 112
    %v2562 = vpop.permute.xlu0 %2561
    %2563 = vrot.lane.b32.xlu0 %v2558, 112
    %v2564 = vpop.permute.xlu0 %2563
    %v2565 = vsel %vm432, %v2562, %v2564
    %v2566 = vsel %vm432, %v2564, %v2562
    %v2567 = vmul.f32 %v2565, %v144
    %v2568 = vmul.f32 %v2566, %v148
    %v2571 = vrot.slane %v2567, 4
    %v2572 = vrot.slane %v2568, 4
    %v2575 = vadd.f32 %v2555, %v2571
    %v2576 = vadd.f32 %v2556, %v2572
    %2577 = vrot.lane.b32.xlu0 %v2435, 111
    %v2578 = vpop.permute.xlu0 %2577
    %2579 = vrot.lane.b32.xlu0 %v2437, 111
    %v2580 = vpop.permute.xlu0 %2579
    %v2581 = vsel %vm1483, %v2578, %v2580
    %v2582 = vsel %vm1483, %v2580, %v2578
    %v2583 = vmul.f32 %v2581, %v1490
    %v2584 = vmul.f32 %v2582, %v1494
    %v2587 = vrot.slane %v2583, 4
    %v2588 = vrot.slane %v2584, 4
    %v2591 = vadd.f32 %v2575, %v2587
    %v2592 = vadd.f32 %v2576, %v2588
    %v2593 = vadd.f32 %v2591, %v1515
    %v2594 = vadd.f32 %v2592, %v1515
    %v2595 = vxor.u32 %v2593, 2147483648
    %v2596 = vxor.u32 %v2594, 2147483648
    %v2597 = vmul.f32 %v2595, 1.442695
    %v2598 = vpow.pop %v2597
    %v2599 = vmul.f32 %v2596, 1.442695
    %v2600 = vpow.pop %v2599
    %v2601 = vadd.f32 %v2598, 1.0
    %v2602 = vadd.f32 %v2600, 1.0
    %v2603 = vrcp.pop %v2601
    %v2604 = vmul.f32 1.0, %v2603
    %v2605 = vrcp.pop %v2602
    %v2606 = vmul.f32 1.0, %v2605
    %v2609 = vcombine.high %v2604, %v2606
    %v2611 = vunpack.c.l.s4 1966171168
    %v2612 = vunpack.c.0.s8 %v2611
    %v2613 = vlaneseq
    %v2614 = vshrl.u32 %v2613, 7
    %v2615 = vsub.s32 %v2612, %v2614
    %v2616 = vrot.slane %v2609, %v2615
    %v2618 = vunpack.c.l.s4 1966171168
    %v2619 = vunpack.c.0.s8 %v2618
    %v2620 = vlaneseq
    %v2621 = vshrl.u32 %v2620, 7
    %v2622 = vsub.s32 %v2619, %v2621
    %v2623 = vrot.slane %v2616, %v2622
    %s2625 = scalar_lea.vmem [#allocation8], 2
    %2626 = vst.msk [vmem:[%s2625] sm:$0x3] %vm1551, %v2623
    // Predicated region
    $region34: #{tpu_custom_call.1} parent=1 // pred_check
      _
    $region35: #{tpu_custom_call.1} parent=1 // pred_check_branch
      %2628 = sbr.rel (0) target = $region37
    $region36: #{tpu_custom_call.1} parent=1 // pred_region
      %s2630 = ssub.s32 64, 64
      %2631 = vsyncadd [#allocation5], %s2630
      %s2632 = sshll.u32 [#allocation8], 4
      %s2633 = int_to_ptr.vmem [resolvable:$true] %s2632
      %2638 = dma.vmem_to_hbm [thread:$0]  %s2633, 64, %s6, [#allocation5], 32, 32, 2
    $region37: #{tpu_custom_call.1} parent=1 // pred_fallthru
      _
    // Predicated region
    $region38: #{tpu_custom_call.1} parent=1 // pred_check
      _
    $region39: #{tpu_custom_call.1} parent=1 // pred_check_branch
      %2640 = sbr.rel (0) target = $region41
    $region40: #{tpu_custom_call.1} parent=1 // pred_region
      %2641 = dma.done [#allocation5], 64
    $region41: #{tpu_custom_call.1} parent=1 // pred_fallthru
      _
    %2642 = vsyncpa [#allocation4], 1
    %2643 = vsyncpa [#allocation7], 1
    %2644 = vsyncpa [#allocation5], 1

</llo_original>
